<compile_context>
chip_gen: v6e
topology: v6e:2x2x1
jax: 0.10.0
libtpu: 0.0.40
codegen_flags: <defaults>
</compile_context>

<pallas_src>
import functools

import jax
import jax.numpy as jnp
from jax import lax
from jax.experimental import pallas as pl
from jax.experimental.pallas import tpu as pltpu


def _elu(x):
    # ELU(alpha=1):  x if x > 0 else exp(x) - 1   (clamp arg of exp to avoid overflow)
    return jnp.where(x > 0, x, jnp.exp(jnp.minimum(x, 0.0)) - 1.0)


def _rnn_encoder_kernel(n_step, bs, gru_dim,
                        x_ref,                 # (n_step*bs, 2*step_len)  direction-paired input
                        win_ref, bin_ref,      # (2*step_len, 6G), (1, 6G)  fused emb+W_ih (both dirs)
                        whh_ref, bhh_ref,      # (2G, 6G) block-diag, (1, 6G)
                        nswT_ref, nsb_ref,     # (n_step, enc), (1, enc)
                        ndwT_ref, ndb_ref,     # (2G, enc),    (1, enc)
                        o_ref):                # (bs, enc)
    f32 = jnp.float32
    G = gru_dim
    G2 = 2 * G

    # One batched MXU matmul: input-side gate pre-activations for every time step and
    # both directions (embedding Linear already folded into the weight).
    # Row (i*bs + b) -> [gates of fwd step i | gates of bwd step n-1-i] for batch b,
    # column layout [r_f, r_b, z_f, z_b, n_f, n_b] (each G wide).
    gi_all = jnp.dot(x_ref[...], win_ref[...],
                     preferred_element_type=f32) + bin_ref[...]        # (n_step*bs, 6G)

    whh = whh_ref[...]
    bhh = bhh_ref[...]

    h = jnp.zeros((bs, G2), f32)        # [h_fwd | h_bwd]
    acc_d = jnp.zeros((bs, G2), f32)    # sum_t elu(out[t])  (fwd cols | bwd cols)
    s_f_cols = []                       # per-step sum_c elu(h_fwd)  -> time i
    s_b_cols = []                       # per-step sum_c elu(h_bwd)  -> time n-1-i

    # Fully-unrolled merged fwd/bwd recurrence: one MXU push (h @ W_hh_blockdiag) per step.
    for i in range(n_step):
        gi = gi_all[i * bs:(i + 1) * bs, :]                            # (bs, 6G) static slice
        gh = jnp.dot(h, whh, preferred_element_type=f32) + bhh         # (bs, 6G)
        r = jax.nn.sigmoid(gi[:, :G2] + gh[:, :G2])
        z = jax.nn.sigmoid(gi[:, G2:2 * G2] + gh[:, G2:2 * G2])
        n = jnp.tanh(gi[:, 2 * G2:] + r * gh[:, 2 * G2:])
        h = (1.0 - z) * n + z * h                                      # (bs, 2G)

        a = _elu(h)
        acc_d = acc_d + a
        s_f_cols.append(jnp.sum(a[:, :G], axis=-1, keepdims=True))     # (bs, 1)
        s_b_cols.append(jnp.sum(a[:, G:], axis=-1, keepdims=True))     # (bs, 1)

    # nn_s head: S[b, t] = sum_c elu(out[t, b, c]); bwd columns reordered to time order.
    S = (jnp.concatenate(s_f_cols, axis=1)
         + jnp.concatenate(s_b_cols[::-1], axis=1))                    # (bs, n_step)
    out_s = (jnp.dot(S, nswT_ref[...], preferred_element_type=f32) / (2.0 * G)
             + nsb_ref[...])                                           # (bs, enc)
    # nn_d head: mean over time of Linear_{2G->enc}(elu(out)).
    out_d = (jnp.dot(acc_d, ndwT_ref[...], preferred_element_type=f32) / float(n_step)
             + ndb_ref[...])                                           # (bs, enc)

    o_ref[...] = _elu(out_s + out_d)
    # TODO(synk): add_clf=True branch (extra Linear + sigmoid) not exercised (default False).


def rnn_encoder_forward(x, params, *, n_step, step_len, gru_dim):
    """x: (bs, 1, seqlen) float32 -> (bs, enc_out_dim) float32."""
    bs = x.shape[0]
    G = gru_dim
    L = step_len
    enc_out = params["nn_s_w"].shape[0]
    f32 = jnp.float32

    x = x.astype(f32)
    emb_wT = params["emb_w"].T.astype(f32)     # (L, h_dim)
    emb_b = params["emb_b"].astype(f32)        # (h_dim,)

    # Fold the embedding Linear into each direction's input-to-hidden projection
    # (tiny one-time matmuls -> do them at highest precision).
    def fuse_in(w_ih, b_ih):
        w_ih_T = w_ih.T.astype(f32)                                        # (h_dim, 3G)
        U = jnp.matmul(emb_wT, w_ih_T, precision="highest")                # (L, 3G)
        c = jnp.matmul(emb_b, w_ih_T, precision="highest") + b_ih.astype(f32)  # (3G,)
        return U, c

    U_f, c_f = fuse_in(params["w_ih_f"], params["b_ih_f"])
    U_b, c_b = fuse_in(params["w_ih_b"], params["b_ih_b"])

    def gate_pair_cols(mf, mb):
        # (..., 3G) fwd gates + (..., 3G) bwd gates -> (..., 6G) as [r_f,r_b,z_f,z_b,n_f,n_b]
        return jnp.concatenate(
            [mf[..., :G], mb[..., :G],
             mf[..., G:2 * G], mb[..., G:2 * G],
             mf[..., 2 * G:], mb[..., 2 * G:]], axis=-1)

    zL = jnp.zeros((L, 3 * G), f32)
    w_in_pair = gate_pair_cols(jnp.concatenate([U_f, zL], axis=0),
                               jnp.concatenate([zL, U_b], axis=0))          # (2L, 6G)
    b_in_pair = gate_pair_cols(c_f, c_b).reshape(1, -1)                     # (1, 6G)

    V_f = params["w_hh_f"].T.astype(f32)   # (G, 3G)
    V_b = params["w_hh_b"].T.astype(f32)
    zG = jnp.zeros((G, 3 * G), f32)
    w_hh_pair = gate_pair_cols(jnp.concatenate([V_f, zG], axis=0),
                               jnp.concatenate([zG, V_b], axis=0))          # (2G, 6G) block-diag
    b_hh_pair = gate_pair_cols(params["b_hh_f"].astype(f32),
                               params["b_hh_b"].astype(f32)).reshape(1, -1)  # (1, 6G)

    # Direction-paired input: row (i*bs + b) = [x[b, time i], x[b, time n_step-1-i]]
    x_tm = jnp.transpose(x.reshape(bs, n_step, L), (1, 0, 2))               # (n_step, bs, L)
    x_pair = jnp.concatenate([x_tm, x_tm[::-1]], axis=-1).reshape(n_step * bs, 2 * L)

    args = (
        x_pair,
        w_in_pair, b_in_pair,
        w_hh_pair, b_hh_pair,
        params["nn_s_w"].T.astype(f32), params["nn_s_b"].reshape(1, -1).astype(f32),
        params["nn_d_w"].T.astype(f32), params["nn_d_b"].reshape(1, -1).astype(f32),
    )

    kernel = functools.partial(_rnn_encoder_kernel, n_step, bs, G)
    vmem_spec = pl.BlockSpec(memory_space=pltpu.MemorySpace.VMEM)
    return pl.pallas_call(
        kernel,
        out_shape=jax.ShapeDtypeStruct((bs, enc_out), f32),
        in_specs=[vmem_spec] * len(args),
        out_specs=vmem_spec,
    )(*args)


# ---------------------------------------------------------------------------
# Pure-JAX reference (mirrors the PyTorch forward exactly) for verification.
# ---------------------------------------------------------------------------
def _ref_forward(x, params, *, n_step, step_len, gru_dim):
    bs = x.shape[0]
    G = gru_dim
    e = x.reshape(bs, n_step, step_len) @ params["emb_w"].T + params["emb_b"]
    e_tm = jnp.transpose(e, (1, 0, 2))                  # (n_step, bs, h_dim)

    def make_step(wih, whh, bih, bhh):
        def step(h, x_t):
            gi = x_t @ wih.T + bih
            gh = h @ whh.T + bhh
            r = jax.nn.sigmoid(gi[:, :G] + gh[:, :G])
            z = jax.nn.sigmoid(gi[:, G:2 * G] + gh[:, G:2 * G])
            n = jnp.tanh(gi[:, 2 * G:] + r * gh[:, 2 * G:])
            h = (1.0 - z) * n + z * h
            return h, h
        return step

    h0 = jnp.zeros((bs, G), jnp.float32)
    _, hf = lax.scan(make_step(params["w_ih_f"], params["w_hh_f"],
                               params["b_ih_f"], params["b_hh_f"]), h0, e_tm)
    _, hb_rev = lax.scan(make_step(params["w_ih_b"], params["w_hh_b"],
                                   params["b_ih_b"], params["b_hh_b"]), h0, e_tm[::-1])
    hb = hb_rev[::-1]
    out = jnp.concatenate([hf, hb], axis=-1)            # (n_step, bs, 2G)
    out_perm = jnp.transpose(out, (1, 2, 0))            # (bs, 2G, n_step)

    out_s = _elu(out_perm) @ params["nn_s_w"].T + params["nn_s_b"]        # (bs, 2G, enc)
    out_s = jnp.mean(jnp.swapaxes(out_s, 1, 2), axis=-1)                  # (bs, enc)
    out_d = _elu(jnp.swapaxes(out_perm, 1, 2)) @ params["nn_d_w"].T + params["nn_d_b"]
    out_d = jnp.mean(jnp.swapaxes(out_d, 1, 2), axis=-1)                  # (bs, enc)
    return _elu(out_d + out_s)


if __name__ == "__main__":
    # small shapes consistent with the module
    bs, seqlen, chunk_len = 2, 64, 8
    h_dim, gru_dim, enc_out_dim = 32, 16, 8
    n_step = seqlen // chunk_len
    G = gru_dim

    key = jax.random.PRNGKey(0)
    ks = jax.random.split(key, 17)

    def u(k, shape, fan_in):
        b = 1.0 / jnp.sqrt(float(fan_in))
        return jax.random.uniform(k, shape, jnp.float32, -b, b)

    params = {
        "emb_w": u(ks[0], (h_dim, chunk_len), chunk_len),
        "emb_b": u(ks[1], (h_dim,), chunk_len),
        "w_ih_f": u(ks[2], (3 * G, h_dim), G),
        "w_hh_f": u(ks[3], (3 * G, G), G),
        "b_ih_f": u(ks[4], (3 * G,), G),
        "b_hh_f": u(ks[5], (3 * G,), G),
        "w_ih_b": u(ks[6], (3 * G, h_dim), G),
        "w_hh_b": u(ks[7], (3 * G, G), G),
        "b_ih_b": u(ks[8], (3 * G,), G),
        "b_hh_b": u(ks[9], (3 * G,), G),
        "nn_s_w": u(ks[10], (enc_out_dim, n_step), n_step),
        "nn_s_b": u(ks[11], (enc_out_dim,), n_step),
        "nn_d_w": u(ks[12], (enc_out_dim, 2 * G), 2 * G),
        "nn_d_b": u(ks[13], (enc_out_dim,), 2 * G),
    }

    x = jax.random.normal(ks[16], (bs, 1, seqlen), jnp.float32)

    out = rnn_encoder_forward(x, params, n_step=n_step, step_len=chunk_len, gru_dim=G)
    out = jax.block_until_ready(out)

    # Reference at full f32 matmul precision; kernel runs at default MXU precision
    # (f32 accumulation), so compare with a tolerance that covers bf16-pass rounding.
    with jax.default_matmul_precision("highest"):
        ref = _ref_forward(x, params, n_step=n_step, step_len=chunk_len, gru_dim=G)
    ref = jax.block_until_ready(ref)

    assert out.shape == (bs, enc_out_dim), out.shape
    assert bool(jnp.all(jnp.isfinite(out)))
    assert jnp.allclose(out, ref, atol=2e-2, rtol=2e-2), (out, ref)

    print("KERNEL_OK")
</pallas_src>

<mosaic_0001>
module attributes {stable_mosaic.version = 11 : i64} {
  func.func @_rnn_encoder_kernel(%arg0: memref<16x16xf32, #tpu.memory_space<vmem>>, %arg1: memref<16x96xf32, #tpu.memory_space<vmem>>, %arg2: memref<1x96xf32, #tpu.memory_space<vmem>>, %arg3: memref<32x96xf32, #tpu.memory_space<vmem>>, %arg4: memref<1x96xf32, #tpu.memory_space<vmem>>, %arg5: memref<8x8xf32, #tpu.memory_space<vmem>>, %arg6: memref<1x8xf32, #tpu.memory_space<vmem>>, %arg7: memref<32x8xf32, #tpu.memory_space<vmem>>, %arg8: memref<1x8xf32, #tpu.memory_space<vmem>>, %arg9: memref<2x8xf32, #tpu.memory_space<vmem>>) attributes {dimension_semantics = [], scalar_prefetch = 0 : i64, scratch_operands = 0 : i64, tpu.core_type = #tpu.core_type<tc>} {
    %c0 = arith.constant 0 : index
    %c0_0 = arith.constant 0 : index
    %0 = vector.load %arg0[%c0, %c0_0] : memref<16x16xf32, #tpu.memory_space<vmem>>, vector<16x16xf32>
    %c0_1 = arith.constant 0 : index
    %c0_2 = arith.constant 0 : index
    %1 = vector.load %arg1[%c0_1, %c0_2] : memref<16x96xf32, #tpu.memory_space<vmem>>, vector<16x96xf32>
    %cst = arith.constant dense<0.000000e+00> : vector<16x96xf32>
    %2 = tpu.matmul %0, %1, %cst {dimension_numbers = #tpu.dot_dimension_numbers<[1], [0], [0], [1], [0, 0, 1, 1], [], []>} : vector<16x16xf32>, vector<16x96xf32>, vector<16x96xf32> -> vector<16x96xf32>
    %c0_3 = arith.constant 0 : index
    %c0_4 = arith.constant 0 : index
    %3 = vector.load %arg2[%c0_3, %c0_4] : memref<1x96xf32, #tpu.memory_space<vmem>>, vector<1x96xf32>
    %4 = vector.broadcast %3 : vector<1x96xf32> to vector<16x96xf32>
    %5 = arith.addf %2, %4 : vector<16x96xf32>
    %c0_5 = arith.constant 0 : index
    %c0_6 = arith.constant 0 : index
    %6 = vector.load %arg3[%c0_5, %c0_6] : memref<32x96xf32, #tpu.memory_space<vmem>>, vector<32x96xf32>
    %c0_7 = arith.constant 0 : index
    %c0_8 = arith.constant 0 : index
    %7 = vector.load %arg4[%c0_7, %c0_8] : memref<1x96xf32, #tpu.memory_space<vmem>>, vector<1x96xf32>
    %cst_9 = arith.constant 0.000000e+00 : f32
    %8 = vector.broadcast %cst_9 : f32 to vector<2x32xf32>
    %cst_10 = arith.constant 0.000000e+00 : f32
    %9 = vector.broadcast %cst_10 : f32 to vector<2x32xf32>
    %10 = vector.extract_strided_slice %5 {offsets = [0, 0], sizes = [2, 96], strides = [1, 1]} : vector<16x96xf32> to vector<2x96xf32>
    %cst_11 = arith.constant dense<0.000000e+00> : vector<2x96xf32>
    %11 = tpu.matmul %8, %6, %cst_11 {dimension_numbers = #tpu.dot_dimension_numbers<[1], [0], [0], [1], [0, 0, 1, 1], [], []>} : vector<2x32xf32>, vector<32x96xf32>, vector<2x96xf32> -> vector<2x96xf32>
    %12 = vector.broadcast %7 : vector<1x96xf32> to vector<2x96xf32>
    %13 = arith.addf %11, %12 : vector<2x96xf32>
    %14 = vector.extract_strided_slice %10 {offsets = [0, 0], sizes = [2, 32], strides = [1, 1]} : vector<2x96xf32> to vector<2x32xf32>
    %15 = vector.extract_strided_slice %13 {offsets = [0, 0], sizes = [2, 32], strides = [1, 1]} : vector<2x96xf32> to vector<2x32xf32>
    %16 = arith.addf %14, %15 : vector<2x32xf32>
    %17 = arith.negf %16 : vector<2x32xf32>
    %18 = math.exp %17 : vector<2x32xf32>
    %cst_12 = arith.constant 1.000000e+00 : f32
    %19 = vector.broadcast %cst_12 : f32 to vector<2x32xf32>
    %20 = arith.addf %19, %18 : vector<2x32xf32>
    %21 = arith.divf %19, %20 : vector<2x32xf32>
    %22 = vector.extract_strided_slice %10 {offsets = [0, 32], sizes = [2, 32], strides = [1, 1]} : vector<2x96xf32> to vector<2x32xf32>
    %23 = vector.extract_strided_slice %13 {offsets = [0, 32], sizes = [2, 32], strides = [1, 1]} : vector<2x96xf32> to vector<2x32xf32>
    %24 = arith.addf %22, %23 : vector<2x32xf32>
    %25 = arith.negf %24 : vector<2x32xf32>
    %26 = math.exp %25 : vector<2x32xf32>
    %cst_13 = arith.constant 1.000000e+00 : f32
    %27 = vector.broadcast %cst_13 : f32 to vector<2x32xf32>
    %28 = arith.addf %27, %26 : vector<2x32xf32>
    %29 = arith.divf %27, %28 : vector<2x32xf32>
    %30 = vector.extract_strided_slice %10 {offsets = [0, 64], sizes = [2, 32], strides = [1, 1]} : vector<2x96xf32> to vector<2x32xf32>
    %31 = vector.extract_strided_slice %13 {offsets = [0, 64], sizes = [2, 32], strides = [1, 1]} : vector<2x96xf32> to vector<2x32xf32>
    %32 = arith.mulf %21, %31 : vector<2x32xf32>
    %33 = arith.addf %30, %32 : vector<2x32xf32>
    %34 = math.tanh %33 : vector<2x32xf32>
    %cst_14 = arith.constant 1.000000e+00 : f32
    %35 = vector.broadcast %cst_14 : f32 to vector<2x32xf32>
    %36 = arith.subf %35, %29 : vector<2x32xf32>
    %37 = arith.mulf %36, %34 : vector<2x32xf32>
    %38 = arith.mulf %29, %8 : vector<2x32xf32>
    %39 = arith.addf %37, %38 : vector<2x32xf32>
    %cst_15 = arith.constant 0.000000e+00 : f32
    %40 = vector.broadcast %cst_15 : f32 to vector<2x32xf32>
    %41 = arith.cmpf ogt, %39, %40 : vector<2x32xf32>
    %cst_16 = arith.constant 0.000000e+00 : f32
    %42 = vector.broadcast %cst_16 : f32 to vector<2x32xf32>
    %43 = arith.minimumf %39, %42 : vector<2x32xf32>
    %44 = math.exp %43 : vector<2x32xf32>
    %cst_17 = arith.constant 1.000000e+00 : f32
    %45 = vector.broadcast %cst_17 : f32 to vector<2x32xf32>
    %46 = arith.subf %44, %45 : vector<2x32xf32>
    %47 = arith.select %41, %39, %46 : vector<2x32xi1>, vector<2x32xf32>
    %48 = arith.addf %9, %47 : vector<2x32xf32>
    %49 = vector.extract_strided_slice %47 {offsets = [0, 0], sizes = [2, 16], strides = [1, 1]} : vector<2x32xf32> to vector<2x16xf32>
    %cst_18 = arith.constant dense<0.000000e+00> : vector<2xf32>
    %50 = vector.multi_reduction <add>, %49, %cst_18 [1] : vector<2x16xf32> to vector<2xf32>
    %51 = vector.shape_cast %50 : vector<2xf32> to vector<2x1xf32>
    %52 = vector.extract_strided_slice %47 {offsets = [0, 16], sizes = [2, 16], strides = [1, 1]} : vector<2x32xf32> to vector<2x16xf32>
    %cst_19 = arith.constant dense<0.000000e+00> : vector<2xf32>
    %53 = vector.multi_reduction <add>, %52, %cst_19 [1] : vector<2x16xf32> to vector<2xf32>
    %54 = vector.shape_cast %53 : vector<2xf32> to vector<2x1xf32>
    %55 = vector.extract_strided_slice %5 {offsets = [2, 0], sizes = [2, 96], strides = [1, 1]} : vector<16x96xf32> to vector<2x96xf32>
    %cst_20 = arith.constant dense<0.000000e+00> : vector<2x96xf32>
    %56 = tpu.matmul %39, %6, %cst_20 {dimension_numbers = #tpu.dot_dimension_numbers<[1], [0], [0], [1], [0, 0, 1, 1], [], []>} : vector<2x32xf32>, vector<32x96xf32>, vector<2x96xf32> -> vector<2x96xf32>
    %57 = vector.broadcast %7 : vector<1x96xf32> to vector<2x96xf32>
    %58 = arith.addf %56, %57 : vector<2x96xf32>
    %59 = vector.extract_strided_slice %55 {offsets = [0, 0], sizes = [2, 32], strides = [1, 1]} : vector<2x96xf32> to vector<2x32xf32>
    %60 = vector.extract_strided_slice %58 {offsets = [0, 0], sizes = [2, 32], strides = [1, 1]} : vector<2x96xf32> to vector<2x32xf32>
    %61 = arith.addf %59, %60 : vector<2x32xf32>
    %62 = arith.negf %61 : vector<2x32xf32>
    %63 = math.exp %62 : vector<2x32xf32>
    %cst_21 = arith.constant 1.000000e+00 : f32
    %64 = vector.broadcast %cst_21 : f32 to vector<2x32xf32>
    %65 = arith.addf %64, %63 : vector<2x32xf32>
    %66 = arith.divf %64, %65 : vector<2x32xf32>
    %67 = vector.extract_strided_slice %55 {offsets = [0, 32], sizes = [2, 32], strides = [1, 1]} : vector<2x96xf32> to vector<2x32xf32>
    %68 = vector.extract_strided_slice %58 {offsets = [0, 32], sizes = [2, 32], strides = [1, 1]} : vector<2x96xf32> to vector<2x32xf32>
    %69 = arith.addf %67, %68 : vector<2x32xf32>
    %70 = arith.negf %69 : vector<2x32xf32>
    %71 = math.exp %70 : vector<2x32xf32>
    %cst_22 = arith.constant 1.000000e+00 : f32
    %72 = vector.broadcast %cst_22 : f32 to vector<2x32xf32>
    %73 = arith.addf %72, %71 : vector<2x32xf32>
    %74 = arith.divf %72, %73 : vector<2x32xf32>
    %75 = vector.extract_strided_slice %55 {offsets = [0, 64], sizes = [2, 32], strides = [1, 1]} : vector<2x96xf32> to vector<2x32xf32>
    %76 = vector.extract_strided_slice %58 {offsets = [0, 64], sizes = [2, 32], strides = [1, 1]} : vector<2x96xf32> to vector<2x32xf32>
    %77 = arith.mulf %66, %76 : vector<2x32xf32>
    %78 = arith.addf %75, %77 : vector<2x32xf32>
    %79 = math.tanh %78 : vector<2x32xf32>
    %cst_23 = arith.constant 1.000000e+00 : f32
    %80 = vector.broadcast %cst_23 : f32 to vector<2x32xf32>
    %81 = arith.subf %80, %74 : vector<2x32xf32>
    %82 = arith.mulf %81, %79 : vector<2x32xf32>
    %83 = arith.mulf %74, %39 : vector<2x32xf32>
    %84 = arith.addf %82, %83 : vector<2x32xf32>
    %cst_24 = arith.constant 0.000000e+00 : f32
    %85 = vector.broadcast %cst_24 : f32 to vector<2x32xf32>
    %86 = arith.cmpf ogt, %84, %85 : vector<2x32xf32>
    %cst_25 = arith.constant 0.000000e+00 : f32
    %87 = vector.broadcast %cst_25 : f32 to vector<2x32xf32>
    %88 = arith.minimumf %84, %87 : vector<2x32xf32>
    %89 = math.exp %88 : vector<2x32xf32>
    %cst_26 = arith.constant 1.000000e+00 : f32
    %90 = vector.broadcast %cst_26 : f32 to vector<2x32xf32>
    %91 = arith.subf %89, %90 : vector<2x32xf32>
    %92 = arith.select %86, %84, %91 : vector<2x32xi1>, vector<2x32xf32>
    %93 = arith.addf %48, %92 : vector<2x32xf32>
    %94 = vector.extract_strided_slice %92 {offsets = [0, 0], sizes = [2, 16], strides = [1, 1]} : vector<2x32xf32> to vector<2x16xf32>
    %cst_27 = arith.constant dense<0.000000e+00> : vector<2xf32>
    %95 = vector.multi_reduction <add>, %94, %cst_27 [1] : vector<2x16xf32> to vector<2xf32>
    %96 = vector.shape_cast %95 : vector<2xf32> to vector<2x1xf32>
    %97 = vector.extract_strided_slice %92 {offsets = [0, 16], sizes = [2, 16], strides = [1, 1]} : vector<2x32xf32> to vector<2x16xf32>
    %cst_28 = arith.constant dense<0.000000e+00> : vector<2xf32>
    %98 = vector.multi_reduction <add>, %97, %cst_28 [1] : vector<2x16xf32> to vector<2xf32>
    %99 = vector.shape_cast %98 : vector<2xf32> to vector<2x1xf32>
    %100 = vector.extract_strided_slice %5 {offsets = [4, 0], sizes = [2, 96], strides = [1, 1]} : vector<16x96xf32> to vector<2x96xf32>
    %cst_29 = arith.constant dense<0.000000e+00> : vector<2x96xf32>
    %101 = tpu.matmul %84, %6, %cst_29 {dimension_numbers = #tpu.dot_dimension_numbers<[1], [0], [0], [1], [0, 0, 1, 1], [], []>} : vector<2x32xf32>, vector<32x96xf32>, vector<2x96xf32> -> vector<2x96xf32>
    %102 = vector.broadcast %7 : vector<1x96xf32> to vector<2x96xf32>
    %103 = arith.addf %101, %102 : vector<2x96xf32>
    %104 = vector.extract_strided_slice %100 {offsets = [0, 0], sizes = [2, 32], strides = [1, 1]} : vector<2x96xf32> to vector<2x32xf32>
    %105 = vector.extract_strided_slice %103 {offsets = [0, 0], sizes = [2, 32], strides = [1, 1]} : vector<2x96xf32> to vector<2x32xf32>
    %106 = arith.addf %104, %105 : vector<2x32xf32>
    %107 = arith.negf %106 : vector<2x32xf32>
    %108 = math.exp %107 : vector<2x32xf32>
    %cst_30 = arith.constant 1.000000e+00 : f32
    %109 = vector.broadcast %cst_30 : f32 to vector<2x32xf32>
    %110 = arith.addf %109, %108 : vector<2x32xf32>
    %111 = arith.divf %109, %110 : vector<2x32xf32>
    %112 = vector.extract_strided_slice %100 {offsets = [0, 32], sizes = [2, 32], strides = [1, 1]} : vector<2x96xf32> to vector<2x32xf32>
    %113 = vector.extract_strided_slice %103 {offsets = [0, 32], sizes = [2, 32], strides = [1, 1]} : vector<2x96xf32> to vector<2x32xf32>
    %114 = arith.addf %112, %113 : vector<2x32xf32>
    %115 = arith.negf %114 : vector<2x32xf32>
    %116 = math.exp %115 : vector<2x32xf32>
    %cst_31 = arith.constant 1.000000e+00 : f32
    %117 = vector.broadcast %cst_31 : f32 to vector<2x32xf32>
    %118 = arith.addf %117, %116 : vector<2x32xf32>
    %119 = arith.divf %117, %118 : vector<2x32xf32>
    %120 = vector.extract_strided_slice %100 {offsets = [0, 64], sizes = [2, 32], strides = [1, 1]} : vector<2x96xf32> to vector<2x32xf32>
    %121 = vector.extract_strided_slice %103 {offsets = [0, 64], sizes = [2, 32], strides = [1, 1]} : vector<2x96xf32> to vector<2x32xf32>
    %122 = arith.mulf %111, %121 : vector<2x32xf32>
    %123 = arith.addf %120, %122 : vector<2x32xf32>
    %124 = math.tanh %123 : vector<2x32xf32>
    %cst_32 = arith.constant 1.000000e+00 : f32
    %125 = vector.broadcast %cst_32 : f32 to vector<2x32xf32>
    %126 = arith.subf %125, %119 : vector<2x32xf32>
    %127 = arith.mulf %126, %124 : vector<2x32xf32>
    %128 = arith.mulf %119, %84 : vector<2x32xf32>
    %129 = arith.addf %127, %128 : vector<2x32xf32>
    %cst_33 = arith.constant 0.000000e+00 : f32
    %130 = vector.broadcast %cst_33 : f32 to vector<2x32xf32>
    %131 = arith.cmpf ogt, %129, %130 : vector<2x32xf32>
    %cst_34 = arith.constant 0.000000e+00 : f32
    %132 = vector.broadcast %cst_34 : f32 to vector<2x32xf32>
    %133 = arith.minimumf %129, %132 : vector<2x32xf32>
    %134 = math.exp %133 : vector<2x32xf32>
    %cst_35 = arith.constant 1.000000e+00 : f32
    %135 = vector.broadcast %cst_35 : f32 to vector<2x32xf32>
    %136 = arith.subf %134, %135 : vector<2x32xf32>
    %137 = arith.select %131, %129, %136 : vector<2x32xi1>, vector<2x32xf32>
    %138 = arith.addf %93, %137 : vector<2x32xf32>
    %139 = vector.extract_strided_slice %137 {offsets = [0, 0], sizes = [2, 16], strides = [1, 1]} : vector<2x32xf32> to vector<2x16xf32>
    %cst_36 = arith.constant dense<0.000000e+00> : vector<2xf32>
    %140 = vector.multi_reduction <add>, %139, %cst_36 [1] : vector<2x16xf32> to vector<2xf32>
    %141 = vector.shape_cast %140 : vector<2xf32> to vector<2x1xf32>
    %142 = vector.extract_strided_slice %137 {offsets = [0, 16], sizes = [2, 16], strides = [1, 1]} : vector<2x32xf32> to vector<2x16xf32>
    %cst_37 = arith.constant dense<0.000000e+00> : vector<2xf32>
    %143 = vector.multi_reduction <add>, %142, %cst_37 [1] : vector<2x16xf32> to vector<2xf32>
    %144 = vector.shape_cast %143 : vector<2xf32> to vector<2x1xf32>
    %145 = vector.extract_strided_slice %5 {offsets = [6, 0], sizes = [2, 96], strides = [1, 1]} : vector<16x96xf32> to vector<2x96xf32>
    %cst_38 = arith.constant dense<0.000000e+00> : vector<2x96xf32>
    %146 = tpu.matmul %129, %6, %cst_38 {dimension_numbers = #tpu.dot_dimension_numbers<[1], [0], [0], [1], [0, 0, 1, 1], [], []>} : vector<2x32xf32>, vector<32x96xf32>, vector<2x96xf32> -> vector<2x96xf32>
    %147 = vector.broadcast %7 : vector<1x96xf32> to vector<2x96xf32>
    %148 = arith.addf %146, %147 : vector<2x96xf32>
    %149 = vector.extract_strided_slice %145 {offsets = [0, 0], sizes = [2, 32], strides = [1, 1]} : vector<2x96xf32> to vector<2x32xf32>
    %150 = vector.extract_strided_slice %148 {offsets = [0, 0], sizes = [2, 32], strides = [1, 1]} : vector<2x96xf32> to vector<2x32xf32>
    %151 = arith.addf %149, %150 : vector<2x32xf32>
    %152 = arith.negf %151 : vector<2x32xf32>
    %153 = math.exp %152 : vector<2x32xf32>
    %cst_39 = arith.constant 1.000000e+00 : f32
    %154 = vector.broadcast %cst_39 : f32 to vector<2x32xf32>
    %155 = arith.addf %154, %153 : vector<2x32xf32>
    %156 = arith.divf %154, %155 : vector<2x32xf32>
    %157 = vector.extract_strided_slice %145 {offsets = [0, 32], sizes = [2, 32], strides = [1, 1]} : vector<2x96xf32> to vector<2x32xf32>
    %158 = vector.extract_strided_slice %148 {offsets = [0, 32], sizes = [2, 32], strides = [1, 1]} : vector<2x96xf32> to vector<2x32xf32>
    %159 = arith.addf %157, %158 : vector<2x32xf32>
    %160 = arith.negf %159 : vector<2x32xf32>
    %161 = math.exp %160 : vector<2x32xf32>
    %cst_40 = arith.constant 1.000000e+00 : f32
    %162 = vector.broadcast %cst_40 : f32 to vector<2x32xf32>
    %163 = arith.addf %162, %161 : vector<2x32xf32>
    %164 = arith.divf %162, %163 : vector<2x32xf32>
    %165 = vector.extract_strided_slice %145 {offsets = [0, 64], sizes = [2, 32], strides = [1, 1]} : vector<2x96xf32> to vector<2x32xf32>
    %166 = vector.extract_strided_slice %148 {offsets = [0, 64], sizes = [2, 32], strides = [1, 1]} : vector<2x96xf32> to vector<2x32xf32>
    %167 = arith.mulf %156, %166 : vector<2x32xf32>
    %168 = arith.addf %165, %167 : vector<2x32xf32>
    %169 = math.tanh %168 : vector<2x32xf32>
    %cst_41 = arith.constant 1.000000e+00 : f32
    %170 = vector.broadcast %cst_41 : f32 to vector<2x32xf32>
    %171 = arith.subf %170, %164 : vector<2x32xf32>
    %172 = arith.mulf %171, %169 : vector<2x32xf32>
    %173 = arith.mulf %164, %129 : vector<2x32xf32>
    %174 = arith.addf %172, %173 : vector<2x32xf32>
    %cst_42 = arith.constant 0.000000e+00 : f32
    %175 = vector.broadcast %cst_42 : f32 to vector<2x32xf32>
    %176 = arith.cmpf ogt, %174, %175 : vector<2x32xf32>
    %cst_43 = arith.constant 0.000000e+00 : f32
    %177 = vector.broadcast %cst_43 : f32 to vector<2x32xf32>
    %178 = arith.minimumf %174, %177 : vector<2x32xf32>
    %179 = math.exp %178 : vector<2x32xf32>
    %cst_44 = arith.constant 1.000000e+00 : f32
    %180 = vector.broadcast %cst_44 : f32 to vector<2x32xf32>
    %181 = arith.subf %179, %180 : vector<2x32xf32>
    %182 = arith.select %176, %174, %181 : vector<2x32xi1>, vector<2x32xf32>
    %183 = arith.addf %138, %182 : vector<2x32xf32>
    %184 = vector.extract_strided_slice %182 {offsets = [0, 0], sizes = [2, 16], strides = [1, 1]} : vector<2x32xf32> to vector<2x16xf32>
    %cst_45 = arith.constant dense<0.000000e+00> : vector<2xf32>
    %185 = vector.multi_reduction <add>, %184, %cst_45 [1] : vector<2x16xf32> to vector<2xf32>
    %186 = vector.shape_cast %185 : vector<2xf32> to vector<2x1xf32>
    %187 = vector.extract_strided_slice %182 {offsets = [0, 16], sizes = [2, 16], strides = [1, 1]} : vector<2x32xf32> to vector<2x16xf32>
    %cst_46 = arith.constant dense<0.000000e+00> : vector<2xf32>
    %188 = vector.multi_reduction <add>, %187, %cst_46 [1] : vector<2x16xf32> to vector<2xf32>
    %189 = vector.shape_cast %188 : vector<2xf32> to vector<2x1xf32>
    %190 = vector.extract_strided_slice %5 {offsets = [8, 0], sizes = [2, 96], strides = [1, 1]} : vector<16x96xf32> to vector<2x96xf32>
    %cst_47 = arith.constant dense<0.000000e+00> : vector<2x96xf32>
    %191 = tpu.matmul %174, %6, %cst_47 {dimension_numbers = #tpu.dot_dimension_numbers<[1], [0], [0], [1], [0, 0, 1, 1], [], []>} : vector<2x32xf32>, vector<32x96xf32>, vector<2x96xf32> -> vector<2x96xf32>
    %192 = vector.broadcast %7 : vector<1x96xf32> to vector<2x96xf32>
    %193 = arith.addf %191, %192 : vector<2x96xf32>
    %194 = vector.extract_strided_slice %190 {offsets = [0, 0], sizes = [2, 32], strides = [1, 1]} : vector<2x96xf32> to vector<2x32xf32>
    %195 = vector.extract_strided_slice %193 {offsets = [0, 0], sizes = [2, 32], strides = [1, 1]} : vector<2x96xf32> to vector<2x32xf32>
    %196 = arith.addf %194, %195 : vector<2x32xf32>
    %197 = arith.negf %196 : vector<2x32xf32>
    %198 = math.exp %197 : vector<2x32xf32>
    %cst_48 = arith.constant 1.000000e+00 : f32
    %199 = vector.broadcast %cst_48 : f32 to vector<2x32xf32>
    %200 = arith.addf %199, %198 : vector<2x32xf32>
    %201 = arith.divf %199, %200 : vector<2x32xf32>
    %202 = vector.extract_strided_slice %190 {offsets = [0, 32], sizes = [2, 32], strides = [1, 1]} : vector<2x96xf32> to vector<2x32xf32>
    %203 = vector.extract_strided_slice %193 {offsets = [0, 32], sizes = [2, 32], strides = [1, 1]} : vector<2x96xf32> to vector<2x32xf32>
    %204 = arith.addf %202, %203 : vector<2x32xf32>
    %205 = arith.negf %204 : vector<2x32xf32>
    %206 = math.exp %205 : vector<2x32xf32>
    %cst_49 = arith.constant 1.000000e+00 : f32
    %207 = vector.broadcast %cst_49 : f32 to vector<2x32xf32>
    %208 = arith.addf %207, %206 : vector<2x32xf32>
    %209 = arith.divf %207, %208 : vector<2x32xf32>
    %210 = vector.extract_strided_slice %190 {offsets = [0, 64], sizes = [2, 32], strides = [1, 1]} : vector<2x96xf32> to vector<2x32xf32>
    %211 = vector.extract_strided_slice %193 {offsets = [0, 64], sizes = [2, 32], strides = [1, 1]} : vector<2x96xf32> to vector<2x32xf32>
    %212 = arith.mulf %201, %211 : vector<2x32xf32>
    %213 = arith.addf %210, %212 : vector<2x32xf32>
    %214 = math.tanh %213 : vector<2x32xf32>
    %cst_50 = arith.constant 1.000000e+00 : f32
    %215 = vector.broadcast %cst_50 : f32 to vector<2x32xf32>
    %216 = arith.subf %215, %209 : vector<2x32xf32>
    %217 = arith.mulf %216, %214 : vector<2x32xf32>
    %218 = arith.mulf %209, %174 : vector<2x32xf32>
    %219 = arith.addf %217, %218 : vector<2x32xf32>
    %cst_51 = arith.constant 0.000000e+00 : f32
    %220 = vector.broadcast %cst_51 : f32 to vector<2x32xf32>
    %221 = arith.cmpf ogt, %219, %220 : vector<2x32xf32>
    %cst_52 = arith.constant 0.000000e+00 : f32
    %222 = vector.broadcast %cst_52 : f32 to vector<2x32xf32>
    %223 = arith.minimumf %219, %222 : vector<2x32xf32>
    %224 = math.exp %223 : vector<2x32xf32>
    %cst_53 = arith.constant 1.000000e+00 : f32
    %225 = vector.broadcast %cst_53 : f32 to vector<2x32xf32>
    %226 = arith.subf %224, %225 : vector<2x32xf32>
    %227 = arith.select %221, %219, %226 : vector<2x32xi1>, vector<2x32xf32>
    %228 = arith.addf %183, %227 : vector<2x32xf32>
    %229 = vector.extract_strided_slice %227 {offsets = [0, 0], sizes = [2, 16], strides = [1, 1]} : vector<2x32xf32> to vector<2x16xf32>
    %cst_54 = arith.constant dense<0.000000e+00> : vector<2xf32>
    %230 = vector.multi_reduction <add>, %229, %cst_54 [1] : vector<2x16xf32> to vector<2xf32>
    %231 = vector.shape_cast %230 : vector<2xf32> to vector<2x1xf32>
    %232 = vector.extract_strided_slice %227 {offsets = [0, 16], sizes = [2, 16], strides = [1, 1]} : vector<2x32xf32> to vector<2x16xf32>
    %cst_55 = arith.constant dense<0.000000e+00> : vector<2xf32>
    %233 = vector.multi_reduction <add>, %232, %cst_55 [1] : vector<2x16xf32> to vector<2xf32>
    %234 = vector.shape_cast %233 : vector<2xf32> to vector<2x1xf32>
    %235 = vector.extract_strided_slice %5 {offsets = [10, 0], sizes = [2, 96], strides = [1, 1]} : vector<16x96xf32> to vector<2x96xf32>
    %cst_56 = arith.constant dense<0.000000e+00> : vector<2x96xf32>
    %236 = tpu.matmul %219, %6, %cst_56 {dimension_numbers = #tpu.dot_dimension_numbers<[1], [0], [0], [1], [0, 0, 1, 1], [], []>} : vector<2x32xf32>, vector<32x96xf32>, vector<2x96xf32> -> vector<2x96xf32>
    %237 = vector.broadcast %7 : vector<1x96xf32> to vector<2x96xf32>
    %238 = arith.addf %236, %237 : vector<2x96xf32>
    %239 = vector.extract_strided_slice %235 {offsets = [0, 0], sizes = [2, 32], strides = [1, 1]} : vector<2x96xf32> to vector<2x32xf32>
    %240 = vector.extract_strided_slice %238 {offsets = [0, 0], sizes = [2, 32], strides = [1, 1]} : vector<2x96xf32> to vector<2x32xf32>
    %241 = arith.addf %239, %240 : vector<2x32xf32>
    %242 = arith.negf %241 : vector<2x32xf32>
    %243 = math.exp %242 : vector<2x32xf32>
    %cst_57 = arith.constant 1.000000e+00 : f32
    %244 = vector.broadcast %cst_57 : f32 to vector<2x32xf32>
    %245 = arith.addf %244, %243 : vector<2x32xf32>
    %246 = arith.divf %244, %245 : vector<2x32xf32>
    %247 = vector.extract_strided_slice %235 {offsets = [0, 32], sizes = [2, 32], strides = [1, 1]} : vector<2x96xf32> to vector<2x32xf32>
    %248 = vector.extract_strided_slice %238 {offsets = [0, 32], sizes = [2, 32], strides = [1, 1]} : vector<2x96xf32> to vector<2x32xf32>
    %249 = arith.addf %247, %248 : vector<2x32xf32>
    %250 = arith.negf %249 : vector<2x32xf32>
    %251 = math.exp %250 : vector<2x32xf32>
    %cst_58 = arith.constant 1.000000e+00 : f32
    %252 = vector.broadcast %cst_58 : f32 to vector<2x32xf32>
    %253 = arith.addf %252, %251 : vector<2x32xf32>
    %254 = arith.divf %252, %253 : vector<2x32xf32>
    %255 = vector.extract_strided_slice %235 {offsets = [0, 64], sizes = [2, 32], strides = [1, 1]} : vector<2x96xf32> to vector<2x32xf32>
    %256 = vector.extract_strided_slice %238 {offsets = [0, 64], sizes = [2, 32], strides = [1, 1]} : vector<2x96xf32> to vector<2x32xf32>
    %257 = arith.mulf %246, %256 : vector<2x32xf32>
    %258 = arith.addf %255, %257 : vector<2x32xf32>
    %259 = math.tanh %258 : vector<2x32xf32>
    %cst_59 = arith.constant 1.000000e+00 : f32
    %260 = vector.broadcast %cst_59 : f32 to vector<2x32xf32>
    %261 = arith.subf %260, %254 : vector<2x32xf32>
    %262 = arith.mulf %261, %259 : vector<2x32xf32>
    %263 = arith.mulf %254, %219 : vector<2x32xf32>
    %264 = arith.addf %262, %263 : vector<2x32xf32>
    %cst_60 = arith.constant 0.000000e+00 : f32
    %265 = vector.broadcast %cst_60 : f32 to vector<2x32xf32>
    %266 = arith.cmpf ogt, %264, %265 : vector<2x32xf32>
    %cst_61 = arith.constant 0.000000e+00 : f32
    %267 = vector.broadcast %cst_61 : f32 to vector<2x32xf32>
    %268 = arith.minimumf %264, %267 : vector<2x32xf32>
    %269 = math.exp %268 : vector<2x32xf32>
    %cst_62 = arith.constant 1.000000e+00 : f32
    %270 = vector.broadcast %cst_62 : f32 to vector<2x32xf32>
    %271 = arith.subf %269, %270 : vector<2x32xf32>
    %272 = arith.select %266, %264, %271 : vector<2x32xi1>, vector<2x32xf32>
    %273 = arith.addf %228, %272 : vector<2x32xf32>
    %274 = vector.extract_strided_slice %272 {offsets = [0, 0], sizes = [2, 16], strides = [1, 1]} : vector<2x32xf32> to vector<2x16xf32>
    %cst_63 = arith.constant dense<0.000000e+00> : vector<2xf32>
    %275 = vector.multi_reduction <add>, %274, %cst_63 [1] : vector<2x16xf32> to vector<2xf32>
    %276 = vector.shape_cast %275 : vector<2xf32> to vector<2x1xf32>
    %277 = vector.extract_strided_slice %272 {offsets = [0, 16], sizes = [2, 16], strides = [1, 1]} : vector<2x32xf32> to vector<2x16xf32>
    %cst_64 = arith.constant dense<0.000000e+00> : vector<2xf32>
    %278 = vector.multi_reduction <add>, %277, %cst_64 [1] : vector<2x16xf32> to vector<2xf32>
    %279 = vector.shape_cast %278 : vector<2xf32> to vector<2x1xf32>
    %280 = vector.extract_strided_slice %5 {offsets = [12, 0], sizes = [2, 96], strides = [1, 1]} : vector<16x96xf32> to vector<2x96xf32>
    %cst_65 = arith.constant dense<0.000000e+00> : vector<2x96xf32>
    %281 = tpu.matmul %264, %6, %cst_65 {dimension_numbers = #tpu.dot_dimension_numbers<[1], [0], [0], [1], [0, 0, 1, 1], [], []>} : vector<2x32xf32>, vector<32x96xf32>, vector<2x96xf32> -> vector<2x96xf32>
    %282 = vector.broadcast %7 : vector<1x96xf32> to vector<2x96xf32>
    %283 = arith.addf %281, %282 : vector<2x96xf32>
    %284 = vector.extract_strided_slice %280 {offsets = [0, 0], sizes = [2, 32], strides = [1, 1]} : vector<2x96xf32> to vector<2x32xf32>
    %285 = vector.extract_strided_slice %283 {offsets = [0, 0], sizes = [2, 32], strides = [1, 1]} : vector<2x96xf32> to vector<2x32xf32>
    %286 = arith.addf %284, %285 : vector<2x32xf32>
    %287 = arith.negf %286 : vector<2x32xf32>
    %288 = math.exp %287 : vector<2x32xf32>
    %cst_66 = arith.constant 1.000000e+00 : f32
    %289 = vector.broadcast %cst_66 : f32 to vector<2x32xf32>
    %290 = arith.addf %289, %288 : vector<2x32xf32>
    %291 = arith.divf %289, %290 : vector<2x32xf32>
    %292 = vector.extract_strided_slice %280 {offsets = [0, 32], sizes = [2, 32], strides = [1, 1]} : vector<2x96xf32> to vector<2x32xf32>
    %293 = vector.extract_strided_slice %283 {offsets = [0, 32], sizes = [2, 32], strides = [1, 1]} : vector<2x96xf32> to vector<2x32xf32>
    %294 = arith.addf %292, %293 : vector<2x32xf32>
    %295 = arith.negf %294 : vector<2x32xf32>
    %296 = math.exp %295 : vector<2x32xf32>
    %cst_67 = arith.constant 1.000000e+00 : f32
    %297 = vector.broadcast %cst_67 : f32 to vector<2x32xf32>
    %298 = arith.addf %297, %296 : vector<2x32xf32>
    %299 = arith.divf %297, %298 : vector<2x32xf32>
    %300 = vector.extract_strided_slice %280 {offsets = [0, 64], sizes = [2, 32], strides = [1, 1]} : vector<2x96xf32> to vector<2x32xf32>
    %301 = vector.extract_strided_slice %283 {offsets = [0, 64], sizes = [2, 32], strides = [1, 1]} : vector<2x96xf32> to vector<2x32xf32>
    %302 = arith.mulf %291, %301 : vector<2x32xf32>
    %303 = arith.addf %300, %302 : vector<2x32xf32>
    %304 = math.tanh %303 : vector<2x32xf32>
    %cst_68 = arith.constant 1.000000e+00 : f32
    %305 = vector.broadcast %cst_68 : f32 to vector<2x32xf32>
    %306 = arith.subf %305, %299 : vector<2x32xf32>
    %307 = arith.mulf %306, %304 : vector<2x32xf32>
    %308 = arith.mulf %299, %264 : vector<2x32xf32>
    %309 = arith.addf %307, %308 : vector<2x32xf32>
    %cst_69 = arith.constant 0.000000e+00 : f32
    %310 = vector.broadcast %cst_69 : f32 to vector<2x32xf32>
    %311 = arith.cmpf ogt, %309, %310 : vector<2x32xf32>
    %cst_70 = arith.constant 0.000000e+00 : f32
    %312 = vector.broadcast %cst_70 : f32 to vector<2x32xf32>
    %313 = arith.minimumf %309, %312 : vector<2x32xf32>
    %314 = math.exp %313 : vector<2x32xf32>
    %cst_71 = arith.constant 1.000000e+00 : f32
    %315 = vector.broadcast %cst_71 : f32 to vector<2x32xf32>
    %316 = arith.subf %314, %315 : vector<2x32xf32>
    %317 = arith.select %311, %309, %316 : vector<2x32xi1>, vector<2x32xf32>
    %318 = arith.addf %273, %317 : vector<2x32xf32>
    %319 = vector.extract_strided_slice %317 {offsets = [0, 0], sizes = [2, 16], strides = [1, 1]} : vector<2x32xf32> to vector<2x16xf32>
    %cst_72 = arith.constant dense<0.000000e+00> : vector<2xf32>
    %320 = vector.multi_reduction <add>, %319, %cst_72 [1] : vector<2x16xf32> to vector<2xf32>
    %321 = vector.shape_cast %320 : vector<2xf32> to vector<2x1xf32>
    %322 = vector.extract_strided_slice %317 {offsets = [0, 16], sizes = [2, 16], strides = [1, 1]} : vector<2x32xf32> to vector<2x16xf32>
    %cst_73 = arith.constant dense<0.000000e+00> : vector<2xf32>
    %323 = vector.multi_reduction <add>, %322, %cst_73 [1] : vector<2x16xf32> to vector<2xf32>
    %324 = vector.shape_cast %323 : vector<2xf32> to vector<2x1xf32>
    %325 = vector.extract_strided_slice %5 {offsets = [14, 0], sizes = [2, 96], strides = [1, 1]} : vector<16x96xf32> to vector<2x96xf32>
    %cst_74 = arith.constant dense<0.000000e+00> : vector<2x96xf32>
    %326 = tpu.matmul %309, %6, %cst_74 {dimension_numbers = #tpu.dot_dimension_numbers<[1], [0], [0], [1], [0, 0, 1, 1], [], []>} : vector<2x32xf32>, vector<32x96xf32>, vector<2x96xf32> -> vector<2x96xf32>
    %327 = vector.broadcast %7 : vector<1x96xf32> to vector<2x96xf32>
    %328 = arith.addf %326, %327 : vector<2x96xf32>
    %329 = vector.extract_strided_slice %325 {offsets = [0, 0], sizes = [2, 32], strides = [1, 1]} : vector<2x96xf32> to vector<2x32xf32>
    %330 = vector.extract_strided_slice %328 {offsets = [0, 0], sizes = [2, 32], strides = [1, 1]} : vector<2x96xf32> to vector<2x32xf32>
    %331 = arith.addf %329, %330 : vector<2x32xf32>
    %332 = arith.negf %331 : vector<2x32xf32>
    %333 = math.exp %332 : vector<2x32xf32>
    %cst_75 = arith.constant 1.000000e+00 : f32
    %334 = vector.broadcast %cst_75 : f32 to vector<2x32xf32>
    %335 = arith.addf %334, %333 : vector<2x32xf32>
    %336 = arith.divf %334, %335 : vector<2x32xf32>
    %337 = vector.extract_strided_slice %325 {offsets = [0, 32], sizes = [2, 32], strides = [1, 1]} : vector<2x96xf32> to vector<2x32xf32>
    %338 = vector.extract_strided_slice %328 {offsets = [0, 32], sizes = [2, 32], strides = [1, 1]} : vector<2x96xf32> to vector<2x32xf32>
    %339 = arith.addf %337, %338 : vector<2x32xf32>
    %340 = arith.negf %339 : vector<2x32xf32>
    %341 = math.exp %340 : vector<2x32xf32>
    %cst_76 = arith.constant 1.000000e+00 : f32
    %342 = vector.broadcast %cst_76 : f32 to vector<2x32xf32>
    %343 = arith.addf %342, %341 : vector<2x32xf32>
    %344 = arith.divf %342, %343 : vector<2x32xf32>
    %345 = vector.extract_strided_slice %325 {offsets = [0, 64], sizes = [2, 32], strides = [1, 1]} : vector<2x96xf32> to vector<2x32xf32>
    %346 = vector.extract_strided_slice %328 {offsets = [0, 64], sizes = [2, 32], strides = [1, 1]} : vector<2x96xf32> to vector<2x32xf32>
    %347 = arith.mulf %336, %346 : vector<2x32xf32>
    %348 = arith.addf %345, %347 : vector<2x32xf32>
    %349 = math.tanh %348 : vector<2x32xf32>
    %cst_77 = arith.constant 1.000000e+00 : f32
    %350 = vector.broadcast %cst_77 : f32 to vector<2x32xf32>
    %351 = arith.subf %350, %344 : vector<2x32xf32>
    %352 = arith.mulf %351, %349 : vector<2x32xf32>
    %353 = arith.mulf %344, %309 : vector<2x32xf32>
    %354 = arith.addf %352, %353 : vector<2x32xf32>
    %cst_78 = arith.constant 0.000000e+00 : f32
    %355 = vector.broadcast %cst_78 : f32 to vector<2x32xf32>
    %356 = arith.cmpf ogt, %354, %355 : vector<2x32xf32>
    %cst_79 = arith.constant 0.000000e+00 : f32
    %357 = vector.broadcast %cst_79 : f32 to vector<2x32xf32>
    %358 = arith.minimumf %354, %357 : vector<2x32xf32>
    %359 = math.exp %358 : vector<2x32xf32>
    %cst_80 = arith.constant 1.000000e+00 : f32
    %360 = vector.broadcast %cst_80 : f32 to vector<2x32xf32>
    %361 = arith.subf %359, %360 : vector<2x32xf32>
    %362 = arith.select %356, %354, %361 : vector<2x32xi1>, vector<2x32xf32>
    %363 = arith.addf %318, %362 : vector<2x32xf32>
    %364 = vector.extract_strided_slice %362 {offsets = [0, 0], sizes = [2, 16], strides = [1, 1]} : vector<2x32xf32> to vector<2x16xf32>
    %cst_81 = arith.constant dense<0.000000e+00> : vector<2xf32>
    %365 = vector.multi_reduction <add>, %364, %cst_81 [1] : vector<2x16xf32> to vector<2xf32>
    %366 = vector.shape_cast %365 : vector<2xf32> to vector<2x1xf32>
    %367 = vector.extract_strided_slice %362 {offsets = [0, 16], sizes = [2, 16], strides = [1, 1]} : vector<2x32xf32> to vector<2x16xf32>
    %cst_82 = arith.constant dense<0.000000e+00> : vector<2xf32>
    %368 = vector.multi_reduction <add>, %367, %cst_82 [1] : vector<2x16xf32> to vector<2xf32>
    %369 = vector.shape_cast %368 : vector<2xf32> to vector<2x1xf32>
    %370 = tpu.concatenate %51, %96, %141, %186, %231, %276, %321, %366 in 1 : vector<2x1xf32>, vector<2x1xf32>, vector<2x1xf32>, vector<2x1xf32>, vector<2x1xf32>, vector<2x1xf32>, vector<2x1xf32>, vector<2x1xf32> -> vector<2x8xf32>
    %371 = tpu.concatenate %369, %324, %279, %234, %189, %144, %99, %54 in 1 : vector<2x1xf32>, vector<2x1xf32>, vector<2x1xf32>, vector<2x1xf32>, vector<2x1xf32>, vector<2x1xf32>, vector<2x1xf32>, vector<2x1xf32> -> vector<2x8xf32>
    %372 = arith.addf %370, %371 : vector<2x8xf32>
    %c0_83 = arith.constant 0 : index
    %c0_84 = arith.constant 0 : index
    %373 = vector.load %arg5[%c0_83, %c0_84] : memref<8x8xf32, #tpu.memory_space<vmem>>, vector<8x8xf32>
    %cst_85 = arith.constant dense<0.000000e+00> : vector<2x8xf32>
    %374 = tpu.matmul %372, %373, %cst_85 {dimension_numbers = #tpu.dot_dimension_numbers<[1], [0], [0], [1], [0, 0, 1, 1], [], []>} : vector<2x8xf32>, vector<8x8xf32>, vector<2x8xf32> -> vector<2x8xf32>
    %cst_86 = arith.constant 3.200000e+01 : f32
    %375 = vector.broadcast %cst_86 : f32 to vector<2x8xf32>
    %376 = arith.divf %374, %375 : vector<2x8xf32>
    %c0_87 = arith.constant 0 : index
    %c0_88 = arith.constant 0 : index
    %377 = vector.load %arg6[%c0_87, %c0_88] : memref<1x8xf32, #tpu.memory_space<vmem>>, vector<1x8xf32>
    %378 = vector.broadcast %377 : vector<1x8xf32> to vector<2x8xf32>
    %379 = arith.addf %376, %378 : vector<2x8xf32>
    %c0_89 = arith.constant 0 : index
    %c0_90 = arith.constant 0 : index
    %380 = vector.load %arg7[%c0_89, %c0_90] : memref<32x8xf32, #tpu.memory_space<vmem>>, vector<32x8xf32>
    %cst_91 = arith.constant dense<0.000000e+00> : vector<2x8xf32>
    %381 = tpu.matmul %363, %380, %cst_91 {dimension_numbers = #tpu.dot_dimension_numbers<[1], [0], [0], [1], [0, 0, 1, 1], [], []>} : vector<2x32xf32>, vector<32x8xf32>, vector<2x8xf32> -> vector<2x8xf32>
    %cst_92 = arith.constant 8.000000e+00 : f32
    %382 = vector.broadcast %cst_92 : f32 to vector<2x8xf32>
    %383 = arith.divf %381, %382 : vector<2x8xf32>
    %c0_93 = arith.constant 0 : index
    %c0_94 = arith.constant 0 : index
    %384 = vector.load %arg8[%c0_93, %c0_94] : memref<1x8xf32, #tpu.memory_space<vmem>>, vector<1x8xf32>
    %385 = vector.broadcast %384 : vector<1x8xf32> to vector<2x8xf32>
    %386 = arith.addf %383, %385 : vector<2x8xf32>
    %387 = arith.addf %379, %386 : vector<2x8xf32>
    %cst_95 = arith.constant 0.000000e+00 : f32
    %388 = vector.broadcast %cst_95 : f32 to vector<2x8xf32>
    %389 = arith.cmpf ogt, %387, %388 : vector<2x8xf32>
    %cst_96 = arith.constant 0.000000e+00 : f32
    %390 = vector.broadcast %cst_96 : f32 to vector<2x8xf32>
    %391 = arith.minimumf %387, %390 : vector<2x8xf32>
    %392 = math.exp %391 : vector<2x8xf32>
    %cst_97 = arith.constant 1.000000e+00 : f32
    %393 = vector.broadcast %cst_97 : f32 to vector<2x8xf32>
    %394 = arith.subf %392, %393 : vector<2x8xf32>
    %395 = arith.select %389, %387, %394 : vector<2x8xi1>, vector<2x8xf32>
    %c0_98 = arith.constant 0 : index
    %c0_99 = arith.constant 0 : index
    %396 = vector.load %arg9[%c0_98, %c0_99] : memref<2x8xf32, #tpu.memory_space<vmem>>, vector<2x8xf32>
    tpu.vector_store %arg9[%c0_98, %c0_99], %395 {strides = array<i32>} : memref<2x8xf32, #tpu.memory_space<vmem>>, vector<2x8xf32>,
    return
  }
}

</mosaic_0001>

<llo_original>
// kernel: tpu_custom_call.1
$region0: #{tpu_custom_call.1}
  #allocation0 [shape = 'u32[]', space=smem, size = 0x4, offset = 0x4, fixed_abs, tag = 'smem constant byte address 0x4 - core index']
  #allocation1 [shape = 'u32[144,128]{1,0:T(1,128)}', space=vmem, size = 0x12000, scoped, tag = 'internal scratch']
  %s0 = inlined_call_operand.hbm [shape: f32[16,16], index: 0, kind: input, shape index: {}]
  %s1 = inlined_call_operand.hbm [shape: f32[16,96], index: 1, kind: input, shape index: {}]
  %s2 = inlined_call_operand.vmem [shape: f32[1,96], index: 2, kind: input, shape index: {}]
  %s3 = inlined_call_operand.vmem [shape: f32[32,96], index: 3, kind: input, shape index: {}]
  %s4 = inlined_call_operand.vmem [shape: f32[1,96], index: 4, kind: input, shape index: {}]
  %s5 = inlined_call_operand.vmem [shape: f32[8,8], index: 5, kind: input, shape index: {}]
  %s6 = inlined_call_operand.vmem [shape: f32[1,8], index: 6, kind: input, shape index: {}]
  %s7 = inlined_call_operand.vmem [shape: f32[32,8], index: 7, kind: input, shape index: {}]
  %s8 = inlined_call_operand.vmem [shape: f32[1,8], index: 8, kind: input, shape index: {}]
  %s9 = inlined_call_operand.hbm [shape: f32[2,8], index: 9, kind: output, shape index: {}]
  %s10 = sld [smem:[#allocation0]]
  $region54: #{tpu_custom_call.1} parent=0
    _
  %s12 = ssub.s32 1, %s10
  %s13 = scalar_select 0, %s12, %s10
  $region1: #{tpu_custom_call.1} parent=0
    #allocation2 [shape = 'u8[8192]{0}', space=vmem, size = 0x2000, scoped, tag = 'input window, operand 0, single buffered']
    #allocation3 [shape = 's32[1]{0}', space=sflag, size = 0x4, scoped, tag = 'scoped memory for tpu_custom_call.1']
    #allocation4 [shape = 's32[1]{0}', space=sflag, size = 0x4, scoped, tag = 'scoped memory for tpu_custom_call.1']
    #allocation5 [shape = 'u8[8192]{0}', space=vmem, size = 0x2000, scoped, tag = 'input window, operand 1, single buffered']
    #allocation6 [shape = 's32[1]{0}', space=sflag, size = 0x4, scoped, tag = 'scoped memory for tpu_custom_call.1']
    #allocation7 [shape = 'u8[1024]{0}', space=vmem, size = 0x400, scoped, tag = 'output window, operand 0, single buffered']
    %14 = vsyncpa [#allocation3], 0
    %15 = vsyncpa [#allocation6], 0
    %16 = vsyncpa [#allocation4], 0
    // Predicated region
    $region2: #{tpu_custom_call.1} parent=1 // pred_check
      _
    $region3: #{tpu_custom_call.1} parent=1 // pred_check_branch
      %18 = sbr.rel (0) target = $region5
    $region4: #{tpu_custom_call.1} parent=1 // pred_region
      %s20 = ssub.s32 256, 256
      %21 = vsyncadd [#allocation3], %s20
      %s22 = sshll.u32 [#allocation2], 4
      %s23 = int_to_ptr.vmem [resolvable:$true] %s22
      %28 = dma.hbm_to_vmem [thread:$0]  %s0, 256, %s23, [#allocation3], 128, 128, 8
    $region5: #{tpu_custom_call.1} parent=1 // pred_fallthru
      _
    // Predicated region
    $region6: #{tpu_custom_call.1} parent=1 // pred_check
      _
    $region7: #{tpu_custom_call.1} parent=1 // pred_check_branch
      %30 = sbr.rel (0) target = $region9
    $region8: #{tpu_custom_call.1} parent=1 // pred_region
      %s32 = ssub.s32 256, 256
      %33 = vsyncadd [#allocation6], %s32
      %s34 = sshll.u32 [#allocation5], 4
      %s35 = int_to_ptr.vmem [resolvable:$true] %s34
      %40 = dma.hbm_to_vmem [thread:$0]  %s1, 256, %s35, [#allocation6], 128, 128, 8
    $region9: #{tpu_custom_call.1} parent=1 // pred_fallthru
      _
    // Predicated region
    $region10: #{tpu_custom_call.1} parent=1 // pred_check
      _
    $region11: #{tpu_custom_call.1} parent=1 // pred_check_branch
      %42 = sbr.rel (0) target = $region13
    $region12: #{tpu_custom_call.1} parent=1 // pred_region
      _
    $region13: #{tpu_custom_call.1} parent=1 // pred_fallthru
      _
    // Predicated region
    $region14: #{tpu_custom_call.1} parent=1 // pred_check
      _
    $region15: #{tpu_custom_call.1} parent=1 // pred_check_branch
      %44 = sbr.rel (0) target = $region17
    $region16: #{tpu_custom_call.1} parent=1 // pred_region
      _
    $region17: #{tpu_custom_call.1} parent=1 // pred_fallthru
      _
    // Predicated region
    $region18: #{tpu_custom_call.1} parent=1 // pred_check
      _
    $region19: #{tpu_custom_call.1} parent=1 // pred_check_branch
      %46 = sbr.rel (0) target = $region21
    $region20: #{tpu_custom_call.1} parent=1 // pred_region
      _
    $region21: #{tpu_custom_call.1} parent=1 // pred_fallthru
      _
    // Predicated region
    $region22: #{tpu_custom_call.1} parent=1 // pred_check
      _
    $region23: #{tpu_custom_call.1} parent=1 // pred_check_branch
      %48 = sbr.rel (0) target = $region25
    $region24: #{tpu_custom_call.1} parent=1 // pred_region
      _
    $region25: #{tpu_custom_call.1} parent=1 // pred_fallthru
      _
    // Predicated region
    $region26: #{tpu_custom_call.1} parent=1 // pred_check
      _
    $region27: #{tpu_custom_call.1} parent=1 // pred_check_branch
      %50 = sbr.rel (0) target = $region29
    $region28: #{tpu_custom_call.1} parent=1 // pred_region
      _
    $region29: #{tpu_custom_call.1} parent=1 // pred_fallthru
      _
    // Predicated region
    $region30: #{tpu_custom_call.1} parent=1 // pred_check
      _
    $region31: #{tpu_custom_call.1} parent=1 // pred_check_branch
      %52 = sbr.rel (0) target = $region33
    $region32: #{tpu_custom_call.1} parent=1 // pred_region
      _
    $region33: #{tpu_custom_call.1} parent=1 // pred_fallthru
      _
    // Predicated region
    $region34: #{tpu_custom_call.1} parent=1 // pred_check
      _
    $region35: #{tpu_custom_call.1} parent=1 // pred_check_branch
      %54 = sbr.rel (0) target = $region37
    $region36: #{tpu_custom_call.1} parent=1 // pred_region
      _
    $region37: #{tpu_custom_call.1} parent=1 // pred_fallthru
      _
    // Predicated region
    $region38: #{tpu_custom_call.1} parent=1 // pred_check
      _
    $region39: #{tpu_custom_call.1} parent=1 // pred_check_branch
      %56 = sbr.rel (0) target = $region41
    $region40: #{tpu_custom_call.1} parent=1 // pred_region
      %57 = dma.done [#allocation3], 256
    $region41: #{tpu_custom_call.1} parent=1 // pred_fallthru
      _
    // Predicated region
    $region42: #{tpu_custom_call.1} parent=1 // pred_check
      _
    $region43: #{tpu_custom_call.1} parent=1 // pred_check_branch
      %59 = sbr.rel (0) target = $region45
    $region44: #{tpu_custom_call.1} parent=1 // pred_region
      %60 = dma.done [#allocation6], 256
    $region45: #{tpu_custom_call.1} parent=1 // pred_fallthru
      _
    %v61 = vld [vmem:[#allocation2] sm:$0xff]
    %v62 = vld [vmem:[#allocation2 + $0x8] sm:$0xff]
    %v63 = vld [vmem:[#allocation5] sm:$0xff]
    %v64 = vld [vmem:[#allocation5 + $0x8] sm:$0xff]
    %v65 = vld [vmem:[%s2] sm:$0x1]
    %v67 = vlaneseq
    %v68 = vshrl.u32 %v67, 7
    %v69 = vsub.s32 0, %v68
    %v70 = vrot.slane %v65, %v69
    %vm72 = vcmask 130048
    %v74 = vsel %vm72, %v61, 0
    %v77 = vsel %vm72, %v62, 0
    %79 = vmatprep.subr.mxu0 0.0
    %80 = vmatpush1.msra.mxu0 0.0
    %81 = vmatprep.subr.mxu0 0.0
    %82 = vmatpush1.msra.mxu0 0.0
    %83 = vmatprep.subr.mxu0 0.0
    %84 = vmatpush1.msra.mxu0 0.0
    %85 = vmatprep.subr.mxu0 0.0
    %86 = vmatpush1.msra.mxu0 0.0
    %87 = vmatprep.subr.mxu0 0.0
    %88 = vmatpush1.msra.mxu0 0.0
    %89 = vmatprep.subr.mxu0 0.0
    %90 = vmatpush1.msra.mxu0 0.0
    %91 = vmatprep.subr.mxu0 0.0
    %92 = vmatpush1.msra.mxu0 0.0
    %93 = vmatprep.subr.mxu0 0.0
    %94 = vmatpush1.msra.mxu0 0.0
    %95 = vmatprep.subr.mxu0 0.0
    %96 = vmatpush1.msra.mxu0 0.0
    %97 = vmatprep.subr.mxu0 0.0
    %98 = vmatpush1.msra.mxu0 0.0
    %99 = vmatprep.subr.mxu0 0.0
    %100 = vmatpush1.msra.mxu0 0.0
    %101 = vmatprep.subr.mxu0 0.0
    %102 = vmatpush1.msra.mxu0 0.0
    %103 = vmatprep.subr.mxu0 0.0
    %104 = vmatpush1.msra.mxu0 0.0
    %105 = vmatprep.subr.mxu0 0.0
    %106 = vmatpush1.msra.mxu0 0.0
    %107 = vmatprep.subr.mxu0 0.0
    %108 = vmatpush1.msra.mxu0 %v64
    %109 = vmatprep.subr.mxu0 0.0
    %110 = vmatpush1.msra.mxu0 %v63
    %111 = vmatprep.subr.mxu0 0.0
    %112 = vmatpush2.msra.mxu0 0.0
    %113 = vmatprep.subr.mxu0 0.0
    %114 = vmatpush2.msra.mxu0 0.0
    %115 = vmatprep.subr.mxu0 0.0
    %116 = vmatpush2.msra.mxu0 0.0
    %117 = vmatprep.subr.mxu0 0.0
    %118 = vmatpush2.msra.mxu0 0.0
    %119 = vmatprep.subr.mxu0 0.0
    %120 = vmatpush2.msra.mxu0 0.0
    %121 = vmatprep.subr.mxu0 0.0
    %122 = vmatpush2.msra.mxu0 0.0
    %123 = vmatprep.subr.mxu0 0.0
    %124 = vmatpush2.msra.mxu0 0.0
    %125 = vmatprep.subr.mxu0 0.0
    %126 = vmatpush2.msra.mxu0 0.0
    %127 = vmatprep.subr.mxu0 0.0
    %128 = vmatpush2.msra.mxu0 0.0
    %129 = vmatprep.subr.mxu0 0.0
    %130 = vmatpush2.msra.mxu0 0.0
    %131 = vmatprep.subr.mxu0 0.0
    %132 = vmatpush2.msra.mxu0 0.0
    %133 = vmatprep.subr.mxu0 0.0
    %134 = vmatpush2.msra.mxu0 0.0
    %135 = vmatprep.subr.mxu0 0.0
    %136 = vmatpush2.msra.mxu0 0.0
    %137 = vmatprep.subr.mxu0 0.0
    %138 = vmatpush2.msra.mxu0 0.0
    %139 = vmatprep.subr.mxu0 0.0
    %140 = vmatpush2.msra.mxu0 0.0
    %141 = vmatprep.subr.mxu0 0.0
    %142 = vmatpush2.msra.mxu0 0.0
    %143 = vmatprep.mubr.f32.mxu0 0.0
    %144 = vmatmul.mubr.f32.gmra.mxu0 %v74
    %v145 = vpop.f32.mrf.mxu0
    %v146 = vadd.f32 %v70, %v145
    %v147 = vpop.f32.mrf.mxu0
    %148 = vmatprep.mubr.f32.mxu0 0.0
    %149 = vmatmul.mubr.f32.gmra.mxu0 %v77
    %v150 = vpop.f32.mrf.mxu0
    %v151 = vadd.f32 %v70, %v150
    %v152 = vpop.f32.mrf.mxu0
    %153 = vdwg.mxu0
    %v154 = vld [vmem:[%s3] sm:$0xff]
    %v155 = vld [vmem:[%s3 + $0x8] sm:$0xff]
    %v156 = vld [vmem:[%s3 + $0x10] sm:$0xff]
    %v157 = vld [vmem:[%s3 + $0x18] sm:$0xff]
    %v158 = vld [vmem:[%s4] sm:$0x1]
    %v160 = vlaneseq
    %v161 = vshrl.u32 %v160, 7
    %v162 = vsub.s32 0, %v161
    %v163 = vrot.slane %v158, %v162
    %vm165 = vcmask 261120
    %v167 = vsel %vm165, 0.0, 0
    %169 = vmatprep.subr.mxu0 0.0
    %170 = vmatpush1.msra.mxu0 0.0
    %171 = vmatprep.subr.mxu0 0.0
    %172 = vmatpush1.msra.mxu0 0.0
    %173 = vmatprep.subr.mxu0 0.0
    %174 = vmatpush1.msra.mxu0 0.0
    %175 = vmatprep.subr.mxu0 0.0
    %176 = vmatpush1.msra.mxu0 0.0
    %177 = vmatprep.subr.mxu0 0.0
    %178 = vmatpush1.msra.mxu0 0.0
    %179 = vmatprep.subr.mxu0 0.0
    %180 = vmatpush1.msra.mxu0 0.0
    %181 = vmatprep.subr.mxu0 0.0
    %182 = vmatpush1.msra.mxu0 0.0
    %183 = vmatprep.subr.mxu0 0.0
    %184 = vmatpush1.msra.mxu0 0.0
    %185 = vmatprep.subr.mxu0 0.0
    %186 = vmatpush1.msra.mxu0 0.0
    %187 = vmatprep.subr.mxu0 0.0
    %188 = vmatpush1.msra.mxu0 0.0
    %189 = vmatprep.subr.mxu0 0.0
    %190 = vmatpush1.msra.mxu0 0.0
    %191 = vmatprep.subr.mxu0 0.0
    %192 = vmatpush1.msra.mxu0 0.0
    %193 = vmatprep.subr.mxu0 0.0
    %194 = vmatpush1.msra.mxu0 %v157
    %195 = vmatprep.subr.mxu0 0.0
    %196 = vmatpush1.msra.mxu0 %v156
    %197 = vmatprep.subr.mxu0 0.0
    %198 = vmatpush1.msra.mxu0 %v155
    %199 = vmatprep.subr.mxu0 0.0
    %200 = vmatpush1.msra.mxu0 %v154
    %201 = vmatprep.subr.mxu0 0.0
    %202 = vmatpush2.msra.mxu0 0.0
    %203 = vmatprep.subr.mxu0 0.0
    %204 = vmatpush2.msra.mxu0 0.0
    %205 = vmatprep.subr.mxu0 0.0
    %206 = vmatpush2.msra.mxu0 0.0
    %207 = vmatprep.subr.mxu0 0.0
    %208 = vmatpush2.msra.mxu0 0.0
    %209 = vmatprep.subr.mxu0 0.0
    %210 = vmatpush2.msra.mxu0 0.0
    %211 = vmatprep.subr.mxu0 0.0
    %212 = vmatpush2.msra.mxu0 0.0
    %213 = vmatprep.subr.mxu0 0.0
    %214 = vmatpush2.msra.mxu0 0.0
    %215 = vmatprep.subr.mxu0 0.0
    %216 = vmatpush2.msra.mxu0 0.0
    %217 = vmatprep.subr.mxu0 0.0
    %218 = vmatpush2.msra.mxu0 0.0
    %219 = vmatprep.subr.mxu0 0.0
    %220 = vmatpush2.msra.mxu0 0.0
    %221 = vmatprep.subr.mxu0 0.0
    %222 = vmatpush2.msra.mxu0 0.0
    %223 = vmatprep.subr.mxu0 0.0
    %224 = vmatpush2.msra.mxu0 0.0
    %225 = vmatprep.subr.mxu0 0.0
    %226 = vmatpush2.msra.mxu0 0.0
    %227 = vmatprep.subr.mxu0 0.0
    %228 = vmatpush2.msra.mxu0 0.0
    %229 = vmatprep.subr.mxu0 0.0
    %230 = vmatpush2.msra.mxu0 0.0
    %231 = vmatprep.subr.mxu0 0.0
    %232 = vmatpush2.msra.mxu0 0.0
    %233 = vmatprep.mubr.f32.mxu0 0.0
    %234 = vmatmul.mubr.f32.gmra.mxu0 %v167
    %v235 = vpop.f32.mrf.mxu0
    %v236 = vadd.f32 %v163, %v235
    %v237 = vpop.f32.mrf.mxu0
    %238 = vdwg.mxu0
    %v239 = vadd.f32 %v146, %v236
    %v240 = vxor.u32 %v239, 2147483648
    %v241 = vmul.f32 %v240, 1.442695
    %v242 = vpow.pop %v241
    %v243 = vadd.f32 %v242, 1.0
    %v244 = vrcp.pop %v243
    %v245 = vmul.f32 1.0, %v244
    %247 = vrot.lane.b32.xlu0 %v236, 64
    %v248 = vpop.permute.xlu0 %247
    %v250 = vmul.f32 %v245, %v248
    %252 = vrot.lane.b32.xlu0 %v250, 64
    %v253 = vpop.permute.xlu0 %252
    %v255 = vadd.f32 %v146, %v253
    %v256 = vtanh.pop %v255
    %v257 = vsub.f32 1.0, %v245
    %259 = vrot.lane.b32.xlu0 %v256, 96
    %v260 = vpop.permute.xlu0 %259
    %v262 = vmul.f32 %v257, %v260
    %v263 = vmul.f32 %v245, 0.0
    %v264 = vadd.f32 %v262, %v263
    %vm265 = vcmp.gt.f32.partialorder %v264, 0.0
    %v266 = vmin.f32 %v264, 0.0
    %v267 = vmul.f32 %v266, 1.442695
    %v268 = vpow.pop %v267
    %v269 = vsub.f32 %v268, 1.0
    %v270 = vsel %vm265, %v264, %v269
    %v271 = vadd.f32 %v270, 0.0
    %273 = vrot.lane.b32.xlu0 %v270, 96
    %v274 = vpop.permute.xlu0 %273
    %vm276 = vcmask 123904
    %v277 = vsel %vm276, %v274, 0.0
    %278 = vadd.xlane.f32.xlu0 %v277
    %v279 = vpop.xlane.xlu0 %278
    %280 = vrot.lane.b32.xlu0 %v270, 80
    %v281 = vpop.permute.xlu0 %280
    %v283 = vsel %vm276, %v281, 0.0
    %284 = vadd.xlane.f32.xlu0 %v283
    %v285 = vpop.xlane.xlu0 %284
    %287 = vrot.lane.b32.xlu0 %v264, 96
    %v288 = vpop.permute.xlu0 %287
    %v289 = vsel %vm165, %v288, 0
    %291 = vmatprep.subr.mxu0 0.0
    %292 = vmatpush1.msra.mxu0 0.0
    %293 = vmatprep.subr.mxu0 0.0
    %294 = vmatpush1.msra.mxu0 0.0
    %295 = vmatprep.subr.mxu0 0.0
    %296 = vmatpush1.msra.mxu0 0.0
    %297 = vmatprep.subr.mxu0 0.0
    %298 = vmatpush1.msra.mxu0 0.0
    %299 = vmatprep.subr.mxu0 0.0
    %300 = vmatpush1.msra.mxu0 0.0
    %301 = vmatprep.subr.mxu0 0.0
    %302 = vmatpush1.msra.mxu0 0.0
    %303 = vmatprep.subr.mxu0 0.0
    %304 = vmatpush1.msra.mxu0 0.0
    %305 = vmatprep.subr.mxu0 0.0
    %306 = vmatpush1.msra.mxu0 0.0
    %307 = vmatprep.subr.mxu0 0.0
    %308 = vmatpush1.msra.mxu0 0.0
    %309 = vmatprep.subr.mxu0 0.0
    %310 = vmatpush1.msra.mxu0 0.0
    %311 = vmatprep.subr.mxu0 0.0
    %312 = vmatpush1.msra.mxu0 0.0
    %313 = vmatprep.subr.mxu0 0.0
    %314 = vmatpush1.msra.mxu0 0.0
    %315 = vmatprep.subr.mxu0 0.0
    %316 = vmatpush1.msra.mxu0 %v157
    %317 = vmatprep.subr.mxu0 0.0
    %318 = vmatpush1.msra.mxu0 %v156
    %319 = vmatprep.subr.mxu0 0.0
    %320 = vmatpush1.msra.mxu0 %v155
    %321 = vmatprep.subr.mxu0 0.0
    %322 = vmatpush1.msra.mxu0 %v154
    %323 = vmatprep.subr.mxu0 0.0
    %324 = vmatpush2.msra.mxu0 0.0
    %325 = vmatprep.subr.mxu0 0.0
    %326 = vmatpush2.msra.mxu0 0.0
    %327 = vmatprep.subr.mxu0 0.0
    %328 = vmatpush2.msra.mxu0 0.0
    %329 = vmatprep.subr.mxu0 0.0
    %330 = vmatpush2.msra.mxu0 0.0
    %331 = vmatprep.subr.mxu0 0.0
    %332 = vmatpush2.msra.mxu0 0.0
    %333 = vmatprep.subr.mxu0 0.0
    %334 = vmatpush2.msra.mxu0 0.0
    %335 = vmatprep.subr.mxu0 0.0
    %336 = vmatpush2.msra.mxu0 0.0
    %337 = vmatprep.subr.mxu0 0.0
    %338 = vmatpush2.msra.mxu0 0.0
    %339 = vmatprep.subr.mxu0 0.0
    %340 = vmatpush2.msra.mxu0 0.0
    %341 = vmatprep.subr.mxu0 0.0
    %342 = vmatpush2.msra.mxu0 0.0
    %343 = vmatprep.subr.mxu0 0.0
    %344 = vmatpush2.msra.mxu0 0.0
    %345 = vmatprep.subr.mxu0 0.0
    %346 = vmatpush2.msra.mxu0 0.0
    %347 = vmatprep.subr.mxu0 0.0
    %348 = vmatpush2.msra.mxu0 0.0
    %349 = vmatprep.subr.mxu0 0.0
    %350 = vmatpush2.msra.mxu0 0.0
    %351 = vmatprep.subr.mxu0 0.0
    %352 = vmatpush2.msra.mxu0 0.0
    %353 = vmatprep.subr.mxu0 0.0
    %354 = vmatpush2.msra.mxu0 0.0
    %355 = vmatprep.mubr.f32.mxu0 0.0
    %356 = vmatmul.mubr.f32.gmra.mxu0 %v289
    %v357 = vpop.f32.mrf.mxu0
    %v358 = vadd.f32 %v163, %v357
    %v359 = vpop.f32.mrf.mxu0
    %360 = vdwg.mxu0
    %v362 = vrot.slane %v358, 6
    %v364 = vadd.f32 %v146, %v362
    %v365 = vxor.u32 %v364, 2147483648
    %v366 = vmul.f32 %v365, 1.442695
    %v367 = vpow.pop %v366
    %v368 = vadd.f32 %v367, 1.0
    %v369 = vrcp.pop %v368
    %v370 = vmul.f32 1.0, %v369
    %371 = vrot.lane.b32.xlu0 %v362, 64
    %v372 = vpop.permute.xlu0 %371
    %v374 = vmul.f32 %v370, %v372
    %376 = vrot.lane.b32.xlu0 %v374, 64
    %v377 = vpop.permute.xlu0 %376
    %v379 = vadd.f32 %v146, %v377
    %v380 = vtanh.pop %v379
    %v381 = vsub.f32 1.0, %v370
    %383 = vrot.lane.b32.xlu0 %v380, 96
    %v384 = vpop.permute.xlu0 %383
    %v386 = vmul.f32 %v381, %v384
    %v387 = vrot.slane %v264, 6
    %v389 = vmul.f32 %v370, %v387
    %v390 = vadd.f32 %v386, %v389
    %vm391 = vcmp.gt.f32.partialorder %v390, 0.0
    %v392 = vmin.f32 %v390, 0.0
    %v393 = vmul.f32 %v392, 1.442695
    %v394 = vpow.pop %v393
    %v395 = vsub.f32 %v394, 1.0
    %v396 = vsel %vm391, %v390, %v395
    %v398 = vrot.slane %v396, 2
    %v400 = vadd.f32 %v271, %v398
    %401 = vrot.lane.b32.xlu0 %v396, 96
    %v402 = vpop.permute.xlu0 %401
    %vm404 = vcmask 125954
    %v405 = vsel %vm404, %v402, 0.0
    %406 = vadd.xlane.f32.xlu0 %v405
    %v407 = vpop.xlane.xlu0 %406
    %408 = vrot.lane.b32.xlu0 %v396, 80
    %v409 = vpop.permute.xlu0 %408
    %v411 = vsel %vm404, %v409, 0.0
    %412 = vadd.xlane.f32.xlu0 %v411
    %v413 = vpop.xlane.xlu0 %412
    %v415 = vrot.slane %v390, 2
    %416 = vrot.lane.b32.xlu0 %v415, 96
    %v417 = vpop.permute.xlu0 %416
    %v418 = vsel %vm165, %v417, 0
    %420 = vmatprep.subr.mxu0 0.0
    %421 = vmatpush1.msra.mxu0 0.0
    %422 = vmatprep.subr.mxu0 0.0
    %423 = vmatpush1.msra.mxu0 0.0
    %424 = vmatprep.subr.mxu0 0.0
    %425 = vmatpush1.msra.mxu0 0.0
    %426 = vmatprep.subr.mxu0 0.0
    %427 = vmatpush1.msra.mxu0 0.0
    %428 = vmatprep.subr.mxu0 0.0
    %429 = vmatpush1.msra.mxu0 0.0
    %430 = vmatprep.subr.mxu0 0.0
    %431 = vmatpush1.msra.mxu0 0.0
    %432 = vmatprep.subr.mxu0 0.0
    %433 = vmatpush1.msra.mxu0 0.0
    %434 = vmatprep.subr.mxu0 0.0
    %435 = vmatpush1.msra.mxu0 0.0
    %436 = vmatprep.subr.mxu0 0.0
    %437 = vmatpush1.msra.mxu0 0.0
    %438 = vmatprep.subr.mxu0 0.0
    %439 = vmatpush1.msra.mxu0 0.0
    %440 = vmatprep.subr.mxu0 0.0
    %441 = vmatpush1.msra.mxu0 0.0
    %442 = vmatprep.subr.mxu0 0.0
    %443 = vmatpush1.msra.mxu0 0.0
    %444 = vmatprep.subr.mxu0 0.0
    %445 = vmatpush1.msra.mxu0 %v157
    %446 = vmatprep.subr.mxu0 0.0
    %447 = vmatpush1.msra.mxu0 %v156
    %448 = vmatprep.subr.mxu0 0.0
    %449 = vmatpush1.msra.mxu0 %v155
    %450 = vmatprep.subr.mxu0 0.0
    %451 = vmatpush1.msra.mxu0 %v154
    %452 = vmatprep.subr.mxu0 0.0
    %453 = vmatpush2.msra.mxu0 0.0
    %454 = vmatprep.subr.mxu0 0.0
    %455 = vmatpush2.msra.mxu0 0.0
    %456 = vmatprep.subr.mxu0 0.0
    %457 = vmatpush2.msra.mxu0 0.0
    %458 = vmatprep.subr.mxu0 0.0
    %459 = vmatpush2.msra.mxu0 0.0
    %460 = vmatprep.subr.mxu0 0.0
    %461 = vmatpush2.msra.mxu0 0.0
    %462 = vmatprep.subr.mxu0 0.0
    %463 = vmatpush2.msra.mxu0 0.0
    %464 = vmatprep.subr.mxu0 0.0
    %465 = vmatpush2.msra.mxu0 0.0
    %466 = vmatprep.subr.mxu0 0.0
    %467 = vmatpush2.msra.mxu0 0.0
    %468 = vmatprep.subr.mxu0 0.0
    %469 = vmatpush2.msra.mxu0 0.0
    %470 = vmatprep.subr.mxu0 0.0
    %471 = vmatpush2.msra.mxu0 0.0
    %472 = vmatprep.subr.mxu0 0.0
    %473 = vmatpush2.msra.mxu0 0.0
    %474 = vmatprep.subr.mxu0 0.0
    %475 = vmatpush2.msra.mxu0 0.0
    %476 = vmatprep.subr.mxu0 0.0
    %477 = vmatpush2.msra.mxu0 0.0
    %478 = vmatprep.subr.mxu0 0.0
    %479 = vmatpush2.msra.mxu0 0.0
    %480 = vmatprep.subr.mxu0 0.0
    %481 = vmatpush2.msra.mxu0 0.0
    %482 = vmatprep.subr.mxu0 0.0
    %483 = vmatpush2.msra.mxu0 0.0
    %484 = vmatprep.mubr.f32.mxu0 0.0
    %485 = vmatmul.mubr.f32.gmra.mxu0 %v418
    %v486 = vpop.f32.mrf.mxu0
    %v487 = vadd.f32 %v163, %v486
    %v488 = vpop.f32.mrf.mxu0
    %489 = vdwg.mxu0
    %v491 = vrot.slane %v487, 4
    %v493 = vadd.f32 %v146, %v491
    %v494 = vxor.u32 %v493, 2147483648
    %v495 = vmul.f32 %v494, 1.442695
    %v496 = vpow.pop %v495
    %v497 = vadd.f32 %v496, 1.0
    %v498 = vrcp.pop %v497
    %v499 = vmul.f32 1.0, %v498
    %500 = vrot.lane.b32.xlu0 %v491, 64
    %v501 = vpop.permute.xlu0 %500
    %v503 = vmul.f32 %v499, %v501
    %505 = vrot.lane.b32.xlu0 %v503, 64
    %v506 = vpop.permute.xlu0 %505
    %v508 = vadd.f32 %v146, %v506
    %v509 = vtanh.pop %v508
    %v510 = vsub.f32 1.0, %v499
    %512 = vrot.lane.b32.xlu0 %v509, 96
    %v513 = vpop.permute.xlu0 %512
    %v515 = vmul.f32 %v510, %v513
    %v516 = vrot.slane %v390, 6
    %v518 = vmul.f32 %v499, %v516
    %v519 = vadd.f32 %v515, %v518
    %vm520 = vcmp.gt.f32.partialorder %v519, 0.0
    %v521 = vmin.f32 %v519, 0.0
    %v522 = vmul.f32 %v521, 1.442695
    %v523 = vpow.pop %v522
    %v524 = vsub.f32 %v523, 1.0
    %v525 = vsel %vm520, %v519, %v524
    %v527 = vrot.slane %v525, 4
    %v529 = vadd.f32 %v400, %v527
    %530 = vrot.lane.b32.xlu0 %v525, 96
    %v531 = vpop.permute.xlu0 %530
    %vm533 = vcmask 128004
    %v534 = vsel %vm533, %v531, 0.0
    %535 = vadd.xlane.f32.xlu0 %v534
    %v536 = vpop.xlane.xlu0 %535
    %537 = vrot.lane.b32.xlu0 %v525, 80
    %v538 = vpop.permute.xlu0 %537
    %v540 = vsel %vm533, %v538, 0.0
    %541 = vadd.xlane.f32.xlu0 %v540
    %v542 = vpop.xlane.xlu0 %541
    %v544 = vrot.slane %v519, 4
    %545 = vrot.lane.b32.xlu0 %v544, 96
    %v546 = vpop.permute.xlu0 %545
    %v547 = vsel %vm165, %v546, 0
    %549 = vmatprep.subr.mxu0 0.0
    %550 = vmatpush1.msra.mxu0 0.0
    %551 = vmatprep.subr.mxu0 0.0
    %552 = vmatpush1.msra.mxu0 0.0
    %553 = vmatprep.subr.mxu0 0.0
    %554 = vmatpush1.msra.mxu0 0.0
    %555 = vmatprep.subr.mxu0 0.0
    %556 = vmatpush1.msra.mxu0 0.0
    %557 = vmatprep.subr.mxu0 0.0
    %558 = vmatpush1.msra.mxu0 0.0
    %559 = vmatprep.subr.mxu0 0.0
    %560 = vmatpush1.msra.mxu0 0.0
    %561 = vmatprep.subr.mxu0 0.0
    %562 = vmatpush1.msra.mxu0 0.0
    %563 = vmatprep.subr.mxu0 0.0
    %564 = vmatpush1.msra.mxu0 0.0
    %565 = vmatprep.subr.mxu0 0.0
    %566 = vmatpush1.msra.mxu0 0.0
    %567 = vmatprep.subr.mxu0 0.0
    %568 = vmatpush1.msra.mxu0 0.0
    %569 = vmatprep.subr.mxu0 0.0
    %570 = vmatpush1.msra.mxu0 0.0
    %571 = vmatprep.subr.mxu0 0.0
    %572 = vmatpush1.msra.mxu0 0.0
    %573 = vmatprep.subr.mxu0 0.0
    %574 = vmatpush1.msra.mxu0 %v157
    %575 = vmatprep.subr.mxu0 0.0
    %576 = vmatpush1.msra.mxu0 %v156
    %577 = vmatprep.subr.mxu0 0.0
    %578 = vmatpush1.msra.mxu0 %v155
    %579 = vmatprep.subr.mxu0 0.0
    %580 = vmatpush1.msra.mxu0 %v154
    %581 = vmatprep.subr.mxu0 0.0
    %582 = vmatpush2.msra.mxu0 0.0
    %583 = vmatprep.subr.mxu0 0.0
    %584 = vmatpush2.msra.mxu0 0.0
    %585 = vmatprep.subr.mxu0 0.0
    %586 = vmatpush2.msra.mxu0 0.0
    %587 = vmatprep.subr.mxu0 0.0
    %588 = vmatpush2.msra.mxu0 0.0
    %589 = vmatprep.subr.mxu0 0.0
    %590 = vmatpush2.msra.mxu0 0.0
    %591 = vmatprep.subr.mxu0 0.0
    %592 = vmatpush2.msra.mxu0 0.0
    %593 = vmatprep.subr.mxu0 0.0
    %594 = vmatpush2.msra.mxu0 0.0
    %595 = vmatprep.subr.mxu0 0.0
    %596 = vmatpush2.msra.mxu0 0.0
    %597 = vmatprep.subr.mxu0 0.0
    %598 = vmatpush2.msra.mxu0 0.0
    %599 = vmatprep.subr.mxu0 0.0
    %600 = vmatpush2.msra.mxu0 0.0
    %601 = vmatprep.subr.mxu0 0.0
    %602 = vmatpush2.msra.mxu0 0.0
    %603 = vmatprep.subr.mxu0 0.0
    %604 = vmatpush2.msra.mxu0 0.0
    %605 = vmatprep.subr.mxu0 0.0
    %606 = vmatpush2.msra.mxu0 0.0
    %607 = vmatprep.subr.mxu0 0.0
    %608 = vmatpush2.msra.mxu0 0.0
    %609 = vmatprep.subr.mxu0 0.0
    %610 = vmatpush2.msra.mxu0 0.0
    %611 = vmatprep.subr.mxu0 0.0
    %612 = vmatpush2.msra.mxu0 0.0
    %613 = vmatprep.mubr.f32.mxu0 0.0
    %614 = vmatmul.mubr.f32.gmra.mxu0 %v547
    %v615 = vpop.f32.mrf.mxu0
    %v616 = vadd.f32 %v163, %v615
    %v617 = vpop.f32.mrf.mxu0
    %618 = vdwg.mxu0
    %v620 = vrot.slane %v616, 2
    %v622 = vadd.f32 %v146, %v620
    %v623 = vxor.u32 %v622, 2147483648
    %v624 = vmul.f32 %v623, 1.442695
    %v625 = vpow.pop %v624
    %v626 = vadd.f32 %v625, 1.0
    %v627 = vrcp.pop %v626
    %v628 = vmul.f32 1.0, %v627
    %629 = vrot.lane.b32.xlu0 %v620, 64
    %v630 = vpop.permute.xlu0 %629
    %v632 = vmul.f32 %v628, %v630
    %634 = vrot.lane.b32.xlu0 %v632, 64
    %v635 = vpop.permute.xlu0 %634
    %v637 = vadd.f32 %v146, %v635
    %v638 = vtanh.pop %v637
    %v639 = vsub.f32 1.0, %v628
    %641 = vrot.lane.b32.xlu0 %v638, 96
    %v642 = vpop.permute.xlu0 %641
    %v644 = vmul.f32 %v639, %v642
    %v645 = vrot.slane %v519, 6
    %v647 = vmul.f32 %v628, %v645
    %v648 = vadd.f32 %v644, %v647
    %vm649 = vcmp.gt.f32.partialorder %v648, 0.0
    %v650 = vmin.f32 %v648, 0.0
    %v651 = vmul.f32 %v650, 1.442695
    %v652 = vpow.pop %v651
    %v653 = vsub.f32 %v652, 1.0
    %v654 = vsel %vm649, %v648, %v653
    %v656 = vrot.slane %v654, 6
    %v658 = vadd.f32 %v529, %v656
    %659 = vrot.lane.b32.xlu0 %v654, 96
    %v660 = vpop.permute.xlu0 %659
    %vm662 = vcmask 130054
    %v663 = vsel %vm662, %v660, 0.0
    %664 = vadd.xlane.f32.xlu0 %v663
    %v665 = vpop.xlane.xlu0 %664
    %666 = vrot.lane.b32.xlu0 %v654, 80
    %v667 = vpop.permute.xlu0 %666
    %v669 = vsel %vm662, %v667, 0.0
    %670 = vadd.xlane.f32.xlu0 %v669
    %v671 = vpop.xlane.xlu0 %670
    %v673 = vrot.slane %v648, 6
    %674 = vrot.lane.b32.xlu0 %v673, 96
    %v675 = vpop.permute.xlu0 %674
    %v676 = vsel %vm165, %v675, 0
    %678 = vmatprep.subr.mxu0 0.0
    %679 = vmatpush1.msra.mxu0 0.0
    %680 = vmatprep.subr.mxu0 0.0
    %681 = vmatpush1.msra.mxu0 0.0
    %682 = vmatprep.subr.mxu0 0.0
    %683 = vmatpush1.msra.mxu0 0.0
    %684 = vmatprep.subr.mxu0 0.0
    %685 = vmatpush1.msra.mxu0 0.0
    %686 = vmatprep.subr.mxu0 0.0
    %687 = vmatpush1.msra.mxu0 0.0
    %688 = vmatprep.subr.mxu0 0.0
    %689 = vmatpush1.msra.mxu0 0.0
    %690 = vmatprep.subr.mxu0 0.0
    %691 = vmatpush1.msra.mxu0 0.0
    %692 = vmatprep.subr.mxu0 0.0
    %693 = vmatpush1.msra.mxu0 0.0
    %694 = vmatprep.subr.mxu0 0.0
    %695 = vmatpush1.msra.mxu0 0.0
    %696 = vmatprep.subr.mxu0 0.0
    %697 = vmatpush1.msra.mxu0 0.0
    %698 = vmatprep.subr.mxu0 0.0
    %699 = vmatpush1.msra.mxu0 0.0
    %700 = vmatprep.subr.mxu0 0.0
    %701 = vmatpush1.msra.mxu0 0.0
    %702 = vmatprep.subr.mxu0 0.0
    %703 = vmatpush1.msra.mxu0 %v157
    %704 = vmatprep.subr.mxu0 0.0
    %705 = vmatpush1.msra.mxu0 %v156
    %706 = vmatprep.subr.mxu0 0.0
    %707 = vmatpush1.msra.mxu0 %v155
    %708 = vmatprep.subr.mxu0 0.0
    %709 = vmatpush1.msra.mxu0 %v154
    %710 = vmatprep.subr.mxu0 0.0
    %711 = vmatpush2.msra.mxu0 0.0
    %712 = vmatprep.subr.mxu0 0.0
    %713 = vmatpush2.msra.mxu0 0.0
    %714 = vmatprep.subr.mxu0 0.0
    %715 = vmatpush2.msra.mxu0 0.0
    %716 = vmatprep.subr.mxu0 0.0
    %717 = vmatpush2.msra.mxu0 0.0
    %718 = vmatprep.subr.mxu0 0.0
    %719 = vmatpush2.msra.mxu0 0.0
    %720 = vmatprep.subr.mxu0 0.0
    %721 = vmatpush2.msra.mxu0 0.0
    %722 = vmatprep.subr.mxu0 0.0
    %723 = vmatpush2.msra.mxu0 0.0
    %724 = vmatprep.subr.mxu0 0.0
    %725 = vmatpush2.msra.mxu0 0.0
    %726 = vmatprep.subr.mxu0 0.0
    %727 = vmatpush2.msra.mxu0 0.0
    %728 = vmatprep.subr.mxu0 0.0
    %729 = vmatpush2.msra.mxu0 0.0
    %730 = vmatprep.subr.mxu0 0.0
    %731 = vmatpush2.msra.mxu0 0.0
    %732 = vmatprep.subr.mxu0 0.0
    %733 = vmatpush2.msra.mxu0 0.0
    %734 = vmatprep.subr.mxu0 0.0
    %735 = vmatpush2.msra.mxu0 0.0
    %736 = vmatprep.subr.mxu0 0.0
    %737 = vmatpush2.msra.mxu0 0.0
    %738 = vmatprep.subr.mxu0 0.0
    %739 = vmatpush2.msra.mxu0 0.0
    %740 = vmatprep.subr.mxu0 0.0
    %741 = vmatpush2.msra.mxu0 0.0
    %742 = vmatprep.mubr.f32.mxu0 0.0
    %743 = vmatmul.mubr.f32.gmra.mxu0 %v676
    %v744 = vpop.f32.mrf.mxu0
    %v745 = vadd.f32 %v163, %v744
    %v746 = vpop.f32.mrf.mxu0
    %747 = vdwg.mxu0
    %v748 = vadd.f32 %v151, %v745
    %v749 = vxor.u32 %v748, 2147483648
    %v750 = vmul.f32 %v749, 1.442695
    %v751 = vpow.pop %v750
    %v752 = vadd.f32 %v751, 1.0
    %v753 = vrcp.pop %v752
    %v754 = vmul.f32 1.0, %v753
    %756 = vrot.lane.b32.xlu0 %v745, 64
    %v757 = vpop.permute.xlu0 %756
    %v759 = vmul.f32 %v754, %v757
    %761 = vrot.lane.b32.xlu0 %v759, 64
    %v762 = vpop.permute.xlu0 %761
    %v764 = vadd.f32 %v151, %v762
    %v765 = vtanh.pop %v764
    %v766 = vsub.f32 1.0, %v754
    %768 = vrot.lane.b32.xlu0 %v765, 96
    %v769 = vpop.permute.xlu0 %768
    %v771 = vmul.f32 %v766, %v769
    %v773 = vmul.f32 %v754, %v673
    %v774 = vadd.f32 %v771, %v773
    %vm775 = vcmp.gt.f32.partialorder %v774, 0.0
    %v776 = vmin.f32 %v774, 0.0
    %v777 = vmul.f32 %v776, 1.442695
    %v778 = vpow.pop %v777
    %v779 = vsub.f32 %v778, 1.0
    %v780 = vsel %vm775, %v774, %v779
    %v781 = vadd.f32 %v658, %v780
    %783 = vrot.lane.b32.xlu0 %v780, 96
    %v784 = vpop.permute.xlu0 %783
    %v786 = vsel %vm276, %v784, 0.0
    %787 = vadd.xlane.f32.xlu0 %v786
    %v788 = vpop.xlane.xlu0 %787
    %789 = vrot.lane.b32.xlu0 %v780, 80
    %v790 = vpop.permute.xlu0 %789
    %v792 = vsel %vm276, %v790, 0.0
    %793 = vadd.xlane.f32.xlu0 %v792
    %v794 = vpop.xlane.xlu0 %793
    %796 = vrot.lane.b32.xlu0 %v774, 96
    %v797 = vpop.permute.xlu0 %796
    %v798 = vsel %vm165, %v797, 0
    %800 = vmatprep.subr.mxu0 0.0
    %801 = vmatpush1.msra.mxu0 0.0
    %802 = vmatprep.subr.mxu0 0.0
    %803 = vmatpush1.msra.mxu0 0.0
    %804 = vmatprep.subr.mxu0 0.0
    %805 = vmatpush1.msra.mxu0 0.0
    %806 = vmatprep.subr.mxu0 0.0
    %807 = vmatpush1.msra.mxu0 0.0
    %808 = vmatprep.subr.mxu0 0.0
    %809 = vmatpush1.msra.mxu0 0.0
    %810 = vmatprep.subr.mxu0 0.0
    %811 = vmatpush1.msra.mxu0 0.0
    %812 = vmatprep.subr.mxu0 0.0
    %813 = vmatpush1.msra.mxu0 0.0
    %814 = vmatprep.subr.mxu0 0.0
    %815 = vmatpush1.msra.mxu0 0.0
    %816 = vmatprep.subr.mxu0 0.0
    %817 = vmatpush1.msra.mxu0 0.0
    %818 = vmatprep.subr.mxu0 0.0
    %819 = vmatpush1.msra.mxu0 0.0
    %820 = vmatprep.subr.mxu0 0.0
    %821 = vmatpush1.msra.mxu0 0.0
    %822 = vmatprep.subr.mxu0 0.0
    %823 = vmatpush1.msra.mxu0 0.0
    %824 = vmatprep.subr.mxu0 0.0
    %825 = vmatpush1.msra.mxu0 %v157
    %826 = vmatprep.subr.mxu0 0.0
    %827 = vmatpush1.msra.mxu0 %v156
    %828 = vmatprep.subr.mxu0 0.0
    %829 = vmatpush1.msra.mxu0 %v155
    %830 = vmatprep.subr.mxu0 0.0
    %831 = vmatpush1.msra.mxu0 %v154
    %832 = vmatprep.subr.mxu0 0.0
    %833 = vmatpush2.msra.mxu0 0.0
    %834 = vmatprep.subr.mxu0 0.0
    %835 = vmatpush2.msra.mxu0 0.0
    %836 = vmatprep.subr.mxu0 0.0
    %837 = vmatpush2.msra.mxu0 0.0
    %838 = vmatprep.subr.mxu0 0.0
    %839 = vmatpush2.msra.mxu0 0.0
    %840 = vmatprep.subr.mxu0 0.0
    %841 = vmatpush2.msra.mxu0 0.0
    %842 = vmatprep.subr.mxu0 0.0
    %843 = vmatpush2.msra.mxu0 0.0
    %844 = vmatprep.subr.mxu0 0.0
    %845 = vmatpush2.msra.mxu0 0.0
    %846 = vmatprep.subr.mxu0 0.0
    %847 = vmatpush2.msra.mxu0 0.0
    %848 = vmatprep.subr.mxu0 0.0
    %849 = vmatpush2.msra.mxu0 0.0
    %850 = vmatprep.subr.mxu0 0.0
    %851 = vmatpush2.msra.mxu0 0.0
    %852 = vmatprep.subr.mxu0 0.0
    %853 = vmatpush2.msra.mxu0 0.0
    %854 = vmatprep.subr.mxu0 0.0
    %855 = vmatpush2.msra.mxu0 0.0
    %856 = vmatprep.subr.mxu0 0.0
    %857 = vmatpush2.msra.mxu0 0.0
    %858 = vmatprep.subr.mxu0 0.0
    %859 = vmatpush2.msra.mxu0 0.0
    %860 = vmatprep.subr.mxu0 0.0
    %861 = vmatpush2.msra.mxu0 0.0
    %862 = vmatprep.subr.mxu0 0.0
    %863 = vmatpush2.msra.mxu0 0.0
    %864 = vmatprep.mubr.f32.mxu0 0.0
    %865 = vmatmul.mubr.f32.gmra.mxu0 %v798
    %v866 = vpop.f32.mrf.mxu0
    %v867 = vadd.f32 %v163, %v866
    %v868 = vpop.f32.mrf.mxu0
    %869 = vdwg.mxu0
    %v871 = vrot.slane %v867, 6
    %v873 = vadd.f32 %v151, %v871
    %v874 = vxor.u32 %v873, 2147483648
    %v875 = vmul.f32 %v874, 1.442695
    %v876 = vpow.pop %v875
    %v877 = vadd.f32 %v876, 1.0
    %v878 = vrcp.pop %v877
    %v879 = vmul.f32 1.0, %v878
    %880 = vrot.lane.b32.xlu0 %v871, 64
    %v881 = vpop.permute.xlu0 %880
    %v883 = vmul.f32 %v879, %v881
    %885 = vrot.lane.b32.xlu0 %v883, 64
    %v886 = vpop.permute.xlu0 %885
    %v888 = vadd.f32 %v151, %v886
    %v889 = vtanh.pop %v888
    %v890 = vsub.f32 1.0, %v879
    %892 = vrot.lane.b32.xlu0 %v889, 96
    %v893 = vpop.permute.xlu0 %892
    %v895 = vmul.f32 %v890, %v893
    %v896 = vrot.slane %v774, 6
    %v898 = vmul.f32 %v879, %v896
    %v899 = vadd.f32 %v895, %v898
    %vm900 = vcmp.gt.f32.partialorder %v899, 0.0
    %v901 = vmin.f32 %v899, 0.0
    %v902 = vmul.f32 %v901, 1.442695
    %v903 = vpow.pop %v902
    %v904 = vsub.f32 %v903, 1.0
    %v905 = vsel %vm900, %v899, %v904
    %v907 = vrot.slane %v905, 2
    %v909 = vadd.f32 %v781, %v907
    %910 = vrot.lane.b32.xlu0 %v905, 96
    %v911 = vpop.permute.xlu0 %910
    %v913 = vsel %vm404, %v911, 0.0
    %914 = vadd.xlane.f32.xlu0 %v913
    %v915 = vpop.xlane.xlu0 %914
    %916 = vrot.lane.b32.xlu0 %v905, 80
    %v917 = vpop.permute.xlu0 %916
    %v919 = vsel %vm404, %v917, 0.0
    %920 = vadd.xlane.f32.xlu0 %v919
    %v921 = vpop.xlane.xlu0 %920
    %v923 = vrot.slane %v899, 2
    %924 = vrot.lane.b32.xlu0 %v923, 96
    %v925 = vpop.permute.xlu0 %924
    %v926 = vsel %vm165, %v925, 0
    %928 = vmatprep.subr.mxu0 0.0
    %929 = vmatpush1.msra.mxu0 0.0
    %930 = vmatprep.subr.mxu0 0.0
    %931 = vmatpush1.msra.mxu0 0.0
    %932 = vmatprep.subr.mxu0 0.0
    %933 = vmatpush1.msra.mxu0 0.0
    %934 = vmatprep.subr.mxu0 0.0
    %935 = vmatpush1.msra.mxu0 0.0
    %936 = vmatprep.subr.mxu0 0.0
    %937 = vmatpush1.msra.mxu0 0.0
    %938 = vmatprep.subr.mxu0 0.0
    %939 = vmatpush1.msra.mxu0 0.0
    %940 = vmatprep.subr.mxu0 0.0
    %941 = vmatpush1.msra.mxu0 0.0
    %942 = vmatprep.subr.mxu0 0.0
    %943 = vmatpush1.msra.mxu0 0.0
    %944 = vmatprep.subr.mxu0 0.0
    %945 = vmatpush1.msra.mxu0 0.0
    %946 = vmatprep.subr.mxu0 0.0
    %947 = vmatpush1.msra.mxu0 0.0
    %948 = vmatprep.subr.mxu0 0.0
    %949 = vmatpush1.msra.mxu0 0.0
    %950 = vmatprep.subr.mxu0 0.0
    %951 = vmatpush1.msra.mxu0 0.0
    %952 = vmatprep.subr.mxu0 0.0
    %953 = vmatpush1.msra.mxu0 %v157
    %954 = vmatprep.subr.mxu0 0.0
    %955 = vmatpush1.msra.mxu0 %v156
    %956 = vmatprep.subr.mxu0 0.0
    %957 = vmatpush1.msra.mxu0 %v155
    %958 = vmatprep.subr.mxu0 0.0
    %959 = vmatpush1.msra.mxu0 %v154
    %960 = vmatprep.subr.mxu0 0.0
    %961 = vmatpush2.msra.mxu0 0.0
    %962 = vmatprep.subr.mxu0 0.0
    %963 = vmatpush2.msra.mxu0 0.0
    %964 = vmatprep.subr.mxu0 0.0
    %965 = vmatpush2.msra.mxu0 0.0
    %966 = vmatprep.subr.mxu0 0.0
    %967 = vmatpush2.msra.mxu0 0.0
    %968 = vmatprep.subr.mxu0 0.0
    %969 = vmatpush2.msra.mxu0 0.0
    %970 = vmatprep.subr.mxu0 0.0
    %971 = vmatpush2.msra.mxu0 0.0
    %972 = vmatprep.subr.mxu0 0.0
    %973 = vmatpush2.msra.mxu0 0.0
    %974 = vmatprep.subr.mxu0 0.0
    %975 = vmatpush2.msra.mxu0 0.0
    %976 = vmatprep.subr.mxu0 0.0
    %977 = vmatpush2.msra.mxu0 0.0
    %978 = vmatprep.subr.mxu0 0.0
    %979 = vmatpush2.msra.mxu0 0.0
    %980 = vmatprep.subr.mxu0 0.0
    %981 = vmatpush2.msra.mxu0 0.0
    %982 = vmatprep.subr.mxu0 0.0
    %983 = vmatpush2.msra.mxu0 0.0
    %984 = vmatprep.subr.mxu0 0.0
    %985 = vmatpush2.msra.mxu0 0.0
    %986 = vmatprep.subr.mxu0 0.0
    %987 = vmatpush2.msra.mxu0 0.0
    %988 = vmatprep.subr.mxu0 0.0
    %989 = vmatpush2.msra.mxu0 0.0
    %990 = vmatprep.subr.mxu0 0.0
    %991 = vmatpush2.msra.mxu0 0.0
    %992 = vmatprep.mubr.f32.mxu0 0.0
    %993 = vmatmul.mubr.f32.gmra.mxu0 %v926
    %v994 = vpop.f32.mrf.mxu0
    %v995 = vadd.f32 %v163, %v994
    %v996 = vpop.f32.mrf.mxu0
    %997 = vdwg.mxu0
    %v999 = vrot.slane %v995, 4
    %v1001 = vadd.f32 %v151, %v999
    %v1002 = vxor.u32 %v1001, 2147483648
    %v1003 = vmul.f32 %v1002, 1.442695
    %v1004 = vpow.pop %v1003
    %v1005 = vadd.f32 %v1004, 1.0
    %v1006 = vrcp.pop %v1005
    %v1007 = vmul.f32 1.0, %v1006
    %1008 = vrot.lane.b32.xlu0 %v999, 64
    %v1009 = vpop.permute.xlu0 %1008
    %v1011 = vmul.f32 %v1007, %v1009
    %1013 = vrot.lane.b32.xlu0 %v1011, 64
    %v1014 = vpop.permute.xlu0 %1013
    %v1016 = vadd.f32 %v151, %v1014
    %v1017 = vtanh.pop %v1016
    %v1018 = vsub.f32 1.0, %v1007
    %1020 = vrot.lane.b32.xlu0 %v1017, 96
    %v1021 = vpop.permute.xlu0 %1020
    %v1023 = vmul.f32 %v1018, %v1021
    %v1024 = vrot.slane %v899, 6
    %v1026 = vmul.f32 %v1007, %v1024
    %v1027 = vadd.f32 %v1023, %v1026
    %vm1028 = vcmp.gt.f32.partialorder %v1027, 0.0
    %v1029 = vmin.f32 %v1027, 0.0
    %v1030 = vmul.f32 %v1029, 1.442695
    %v1031 = vpow.pop %v1030
    %v1032 = vsub.f32 %v1031, 1.0
    %v1033 = vsel %vm1028, %v1027, %v1032
    %v1035 = vrot.slane %v1033, 4
    %v1037 = vadd.f32 %v909, %v1035
    %1038 = vrot.lane.b32.xlu0 %v1033, 96
    %v1039 = vpop.permute.xlu0 %1038
    %v1041 = vsel %vm533, %v1039, 0.0
    %1042 = vadd.xlane.f32.xlu0 %v1041
    %v1043 = vpop.xlane.xlu0 %1042
    %1044 = vrot.lane.b32.xlu0 %v1033, 80
    %v1045 = vpop.permute.xlu0 %1044
    %v1047 = vsel %vm533, %v1045, 0.0
    %1048 = vadd.xlane.f32.xlu0 %v1047
    %v1049 = vpop.xlane.xlu0 %1048
    %v1051 = vrot.slane %v1027, 4
    %1052 = vrot.lane.b32.xlu0 %v1051, 96
    %v1053 = vpop.permute.xlu0 %1052
    %v1054 = vsel %vm165, %v1053, 0
    %1056 = vmatprep.subr.mxu0 0.0
    %1057 = vmatpush1.msra.mxu0 0.0
    %1058 = vmatprep.subr.mxu0 0.0
    %1059 = vmatpush1.msra.mxu0 0.0
    %1060 = vmatprep.subr.mxu0 0.0
    %1061 = vmatpush1.msra.mxu0 0.0
    %1062 = vmatprep.subr.mxu0 0.0
    %1063 = vmatpush1.msra.mxu0 0.0
    %1064 = vmatprep.subr.mxu0 0.0
    %1065 = vmatpush1.msra.mxu0 0.0
    %1066 = vmatprep.subr.mxu0 0.0
    %1067 = vmatpush1.msra.mxu0 0.0
    %1068 = vmatprep.subr.mxu0 0.0
    %1069 = vmatpush1.msra.mxu0 0.0
    %1070 = vmatprep.subr.mxu0 0.0
    %1071 = vmatpush1.msra.mxu0 0.0
    %1072 = vmatprep.subr.mxu0 0.0
    %1073 = vmatpush1.msra.mxu0 0.0
    %1074 = vmatprep.subr.mxu0 0.0
    %1075 = vmatpush1.msra.mxu0 0.0
    %1076 = vmatprep.subr.mxu0 0.0
    %1077 = vmatpush1.msra.mxu0 0.0
    %1078 = vmatprep.subr.mxu0 0.0
    %1079 = vmatpush1.msra.mxu0 0.0
    %1080 = vmatprep.subr.mxu0 0.0
    %1081 = vmatpush1.msra.mxu0 %v157
    %1082 = vmatprep.subr.mxu0 0.0
    %1083 = vmatpush1.msra.mxu0 %v156
    %1084 = vmatprep.subr.mxu0 0.0
    %1085 = vmatpush1.msra.mxu0 %v155
    %1086 = vmatprep.subr.mxu0 0.0
    %1087 = vmatpush1.msra.mxu0 %v154
    %1088 = vmatprep.subr.mxu0 0.0
    %1089 = vmatpush2.msra.mxu0 0.0
    %1090 = vmatprep.subr.mxu0 0.0
    %1091 = vmatpush2.msra.mxu0 0.0
    %1092 = vmatprep.subr.mxu0 0.0
    %1093 = vmatpush2.msra.mxu0 0.0
    %1094 = vmatprep.subr.mxu0 0.0
    %1095 = vmatpush2.msra.mxu0 0.0
    %1096 = vmatprep.subr.mxu0 0.0
    %1097 = vmatpush2.msra.mxu0 0.0
    %1098 = vmatprep.subr.mxu0 0.0
    %1099 = vmatpush2.msra.mxu0 0.0
    %1100 = vmatprep.subr.mxu0 0.0
    %1101 = vmatpush2.msra.mxu0 0.0
    %1102 = vmatprep.subr.mxu0 0.0
    %1103 = vmatpush2.msra.mxu0 0.0
    %1104 = vmatprep.subr.mxu0 0.0
    %1105 = vmatpush2.msra.mxu0 0.0
    %1106 = vmatprep.subr.mxu0 0.0
    %1107 = vmatpush2.msra.mxu0 0.0
    %1108 = vmatprep.subr.mxu0 0.0
    %1109 = vmatpush2.msra.mxu0 0.0
    %1110 = vmatprep.subr.mxu0 0.0
    %1111 = vmatpush2.msra.mxu0 0.0
    %1112 = vmatprep.subr.mxu0 0.0
    %1113 = vmatpush2.msra.mxu0 0.0
    %1114 = vmatprep.subr.mxu0 0.0
    %1115 = vmatpush2.msra.mxu0 0.0
    %1116 = vmatprep.subr.mxu0 0.0
    %1117 = vmatpush2.msra.mxu0 0.0
    %1118 = vmatprep.subr.mxu0 0.0
    %1119 = vmatpush2.msra.mxu0 0.0
    %1120 = vmatprep.mubr.f32.mxu0 0.0
    %1121 = vmatmul.mubr.f32.gmra.mxu0 %v1054
    %v1122 = vpop.f32.mrf.mxu0
    %v1123 = vadd.f32 %v163, %v1122
    %v1124 = vpop.f32.mrf.mxu0
    %1125 = vdwg.mxu0
    %v1127 = vrot.slane %v1123, 2
    %v1129 = vadd.f32 %v151, %v1127
    %v1130 = vxor.u32 %v1129, 2147483648
    %v1131 = vmul.f32 %v1130, 1.442695
    %v1132 = vpow.pop %v1131
    %v1133 = vadd.f32 %v1132, 1.0
    %v1134 = vrcp.pop %v1133
    %v1135 = vmul.f32 1.0, %v1134
    %1136 = vrot.lane.b32.xlu0 %v1127, 64
    %v1137 = vpop.permute.xlu0 %1136
    %v1139 = vmul.f32 %v1135, %v1137
    %1141 = vrot.lane.b32.xlu0 %v1139, 64
    %v1142 = vpop.permute.xlu0 %1141
    %v1144 = vadd.f32 %v151, %v1142
    %v1145 = vtanh.pop %v1144
    %v1146 = vsub.f32 1.0, %v1135
    %1148 = vrot.lane.b32.xlu0 %v1145, 96
    %v1149 = vpop.permute.xlu0 %1148
    %v1151 = vmul.f32 %v1146, %v1149
    %v1152 = vrot.slane %v1027, 6
    %v1154 = vmul.f32 %v1135, %v1152
    %v1155 = vadd.f32 %v1151, %v1154
    %vm1156 = vcmp.gt.f32.partialorder %v1155, 0.0
    %v1157 = vmin.f32 %v1155, 0.0
    %v1158 = vmul.f32 %v1157, 1.442695
    %v1159 = vpow.pop %v1158
    %v1160 = vsub.f32 %v1159, 1.0
    %v1161 = vsel %vm1156, %v1155, %v1160
    %v1163 = vrot.slane %v1161, 6
    %v1165 = vadd.f32 %v1037, %v1163
    %1166 = vrot.lane.b32.xlu0 %v1161, 96
    %v1167 = vpop.permute.xlu0 %1166
    %v1169 = vsel %vm662, %v1167, 0.0
    %1170 = vadd.xlane.f32.xlu0 %v1169
    %v1171 = vpop.xlane.xlu0 %1170
    %1172 = vrot.lane.b32.xlu0 %v1161, 80
    %v1173 = vpop.permute.xlu0 %1172
    %v1175 = vsel %vm662, %v1173, 0.0
    %1176 = vadd.xlane.f32.xlu0 %v1175
    %v1177 = vpop.xlane.xlu0 %1176
    %v1179 = vrot.slane %v407, 2
    %v1182 = vrot.slane %v536, 4
    %v1185 = vrot.slane %v665, 6
    %v1188 = vrot.slane %v915, 2
    %v1191 = vrot.slane %v1043, 4
    %v1194 = vrot.slane %v1171, 6
    %vm1196 = vcmask 7168
    %v1197 = vsel %vm1196, %v279, %v1179
    %vm1198 = vcmask 15360
    %v1199 = vsel %vm1198, %v1197, %v1182
    %vm1200 = vcmask 23552
    %v1201 = vsel %vm1200, %v1199, %v1185
    %vm1202 = vcmask 31744
    %v1203 = vsel %vm1202, %v1201, %v788
    %vm1204 = vcmask 39936
    %v1205 = vsel %vm1204, %v1203, %v1188
    %vm1206 = vcmask 48128
    %v1207 = vsel %vm1206, %v1205, %v1191
    %vm1208 = vcmask 56320
    %v1209 = vsel %vm1208, %v1207, %v1194
    %v1211 = vrot.slane %v1049, 6
    %v1214 = vrot.slane %v921, 4
    %v1217 = vrot.slane %v794, 2
    %v1220 = vrot.slane %v542, 6
    %v1223 = vrot.slane %v413, 4
    %v1226 = vrot.slane %v285, 2
    %v1228 = vsel %vm1196, %v1177, %v1211
    %v1229 = vsel %vm1198, %v1228, %v1214
    %v1230 = vsel %vm1200, %v1229, %v1217
    %v1231 = vsel %vm1202, %v1230, %v671
    %v1232 = vsel %vm1204, %v1231, %v1220
    %v1233 = vsel %vm1206, %v1232, %v1223
    %v1234 = vsel %vm1208, %v1233, %v1226
    %v1236 = vrot.slane %v1234, 6
    %v1238 = vadd.f32 %v1209, %v1236
    %v1239 = vld [vmem:[%s5] sm:$0xff]
    %vm1240 = vcmask 64512
    %v1242 = vsel %vm1240, %v1238, 0
    %1244 = vmatprep.subr.mxu0 0.0
    %1245 = vmatpush1.msra.mxu0 0.0
    %1246 = vmatprep.subr.mxu0 0.0
    %1247 = vmatpush1.msra.mxu0 0.0
    %1248 = vmatprep.subr.mxu0 0.0
    %1249 = vmatpush1.msra.mxu0 0.0
    %1250 = vmatprep.subr.mxu0 0.0
    %1251 = vmatpush1.msra.mxu0 0.0
    %1252 = vmatprep.subr.mxu0 0.0
    %1253 = vmatpush1.msra.mxu0 0.0
    %1254 = vmatprep.subr.mxu0 0.0
    %1255 = vmatpush1.msra.mxu0 0.0
    %1256 = vmatprep.subr.mxu0 0.0
    %1257 = vmatpush1.msra.mxu0 0.0
    %1258 = vmatprep.subr.mxu0 0.0
    %1259 = vmatpush1.msra.mxu0 0.0
    %1260 = vmatprep.subr.mxu0 0.0
    %1261 = vmatpush1.msra.mxu0 0.0
    %1262 = vmatprep.subr.mxu0 0.0
    %1263 = vmatpush1.msra.mxu0 0.0
    %1264 = vmatprep.subr.mxu0 0.0
    %1265 = vmatpush1.msra.mxu0 0.0
    %1266 = vmatprep.subr.mxu0 0.0
    %1267 = vmatpush1.msra.mxu0 0.0
    %1268 = vmatprep.subr.mxu0 0.0
    %1269 = vmatpush1.msra.mxu0 0.0
    %1270 = vmatprep.subr.mxu0 0.0
    %1271 = vmatpush1.msra.mxu0 0.0
    %1272 = vmatprep.subr.mxu0 0.0
    %1273 = vmatpush1.msra.mxu0 0.0
    %1274 = vmatprep.subr.mxu0 0.0
    %1275 = vmatpush1.msra.mxu0 %v1239
    %1276 = vmatprep.subr.mxu0 0.0
    %1277 = vmatpush2.msra.mxu0 0.0
    %1278 = vmatprep.subr.mxu0 0.0
    %1279 = vmatpush2.msra.mxu0 0.0
    %1280 = vmatprep.subr.mxu0 0.0
    %1281 = vmatpush2.msra.mxu0 0.0
    %1282 = vmatprep.subr.mxu0 0.0
    %1283 = vmatpush2.msra.mxu0 0.0
    %1284 = vmatprep.subr.mxu0 0.0
    %1285 = vmatpush2.msra.mxu0 0.0
    %1286 = vmatprep.subr.mxu0 0.0
    %1287 = vmatpush2.msra.mxu0 0.0
    %1288 = vmatprep.subr.mxu0 0.0
    %1289 = vmatpush2.msra.mxu0 0.0
    %1290 = vmatprep.subr.mxu0 0.0
    %1291 = vmatpush2.msra.mxu0 0.0
    %1292 = vmatprep.subr.mxu0 0.0
    %1293 = vmatpush2.msra.mxu0 0.0
    %1294 = vmatprep.subr.mxu0 0.0
    %1295 = vmatpush2.msra.mxu0 0.0
    %1296 = vmatprep.subr.mxu0 0.0
    %1297 = vmatpush2.msra.mxu0 0.0
    %1298 = vmatprep.subr.mxu0 0.0
    %1299 = vmatpush2.msra.mxu0 0.0
    %1300 = vmatprep.subr.mxu0 0.0
    %1301 = vmatpush2.msra.mxu0 0.0
    %1302 = vmatprep.subr.mxu0 0.0
    %1303 = vmatpush2.msra.mxu0 0.0
    %1304 = vmatprep.subr.mxu0 0.0
    %1305 = vmatpush2.msra.mxu0 0.0
    %1306 = vmatprep.subr.mxu0 0.0
    %1307 = vmatpush2.msra.mxu0 0.0
    %1308 = vmatprep.mubr.f32.mxu0 0.0
    %1309 = vmatmul.mubr.f32.gmra.mxu0 %v1242
    %v1310 = vpop.f32.mrf.mxu0
    %v1311 = vadd.f32 0.0, %v1310
    %v1312 = vpop.f32.mrf.mxu0
    %1313 = vdwg.mxu0
    %v1314 = vrcp.pop 32.0
    %v1315 = vmul.f32 %v1311, %v1314
    %v1316 = vld [vmem:[%s6] sm:$0x1]
    %v1318 = vlaneseq
    %v1319 = vshrl.u32 %v1318, 7
    %v1320 = vsub.s32 0, %v1319
    %v1321 = vrot.slane %v1316, %v1320
    %v1323 = vadd.f32 %v1315, %v1321
    %v1324 = vld [vmem:[%s7] sm:$0xff]
    %v1325 = vld [vmem:[%s7 + $0x8] sm:$0xff]
    %v1326 = vld [vmem:[%s7 + $0x10] sm:$0xff]
    %v1327 = vld [vmem:[%s7 + $0x18] sm:$0xff]
    %1329 = vrot.lane.b32.xlu0 %v1165, 96
    %v1330 = vpop.permute.xlu0 %1329
    %v1331 = vsel %vm165, %v1330, 0
    %1333 = vmatprep.subr.mxu0 0.0
    %1334 = vmatpush1.msra.mxu0 0.0
    %1335 = vmatprep.subr.mxu0 0.0
    %1336 = vmatpush1.msra.mxu0 0.0
    %1337 = vmatprep.subr.mxu0 0.0
    %1338 = vmatpush1.msra.mxu0 0.0
    %1339 = vmatprep.subr.mxu0 0.0
    %1340 = vmatpush1.msra.mxu0 0.0
    %1341 = vmatprep.subr.mxu0 0.0
    %1342 = vmatpush1.msra.mxu0 0.0
    %1343 = vmatprep.subr.mxu0 0.0
    %1344 = vmatpush1.msra.mxu0 0.0
    %1345 = vmatprep.subr.mxu0 0.0
    %1346 = vmatpush1.msra.mxu0 0.0
    %1347 = vmatprep.subr.mxu0 0.0
    %1348 = vmatpush1.msra.mxu0 0.0
    %1349 = vmatprep.subr.mxu0 0.0
    %1350 = vmatpush1.msra.mxu0 0.0
    %1351 = vmatprep.subr.mxu0 0.0
    %1352 = vmatpush1.msra.mxu0 0.0
    %1353 = vmatprep.subr.mxu0 0.0
    %1354 = vmatpush1.msra.mxu0 0.0
    %1355 = vmatprep.subr.mxu0 0.0
    %1356 = vmatpush1.msra.mxu0 0.0
    %1357 = vmatprep.subr.mxu0 0.0
    %1358 = vmatpush1.msra.mxu0 %v1327
    %1359 = vmatprep.subr.mxu0 0.0
    %1360 = vmatpush1.msra.mxu0 %v1326
    %1361 = vmatprep.subr.mxu0 0.0
    %1362 = vmatpush1.msra.mxu0 %v1325
    %1363 = vmatprep.subr.mxu0 0.0
    %1364 = vmatpush1.msra.mxu0 %v1324
    %1365 = vmatprep.subr.mxu0 0.0
    %1366 = vmatpush2.msra.mxu0 0.0
    %1367 = vmatprep.subr.mxu0 0.0
    %1368 = vmatpush2.msra.mxu0 0.0
    %1369 = vmatprep.subr.mxu0 0.0
    %1370 = vmatpush2.msra.mxu0 0.0
    %1371 = vmatprep.subr.mxu0 0.0
    %1372 = vmatpush2.msra.mxu0 0.0
    %1373 = vmatprep.subr.mxu0 0.0
    %1374 = vmatpush2.msra.mxu0 0.0
    %1375 = vmatprep.subr.mxu0 0.0
    %1376 = vmatpush2.msra.mxu0 0.0
    %1377 = vmatprep.subr.mxu0 0.0
    %1378 = vmatpush2.msra.mxu0 0.0
    %1379 = vmatprep.subr.mxu0 0.0
    %1380 = vmatpush2.msra.mxu0 0.0
    %1381 = vmatprep.subr.mxu0 0.0
    %1382 = vmatpush2.msra.mxu0 0.0
    %1383 = vmatprep.subr.mxu0 0.0
    %1384 = vmatpush2.msra.mxu0 0.0
    %1385 = vmatprep.subr.mxu0 0.0
    %1386 = vmatpush2.msra.mxu0 0.0
    %1387 = vmatprep.subr.mxu0 0.0
    %1388 = vmatpush2.msra.mxu0 0.0
    %1389 = vmatprep.subr.mxu0 0.0
    %1390 = vmatpush2.msra.mxu0 0.0
    %1391 = vmatprep.subr.mxu0 0.0
    %1392 = vmatpush2.msra.mxu0 0.0
    %1393 = vmatprep.subr.mxu0 0.0
    %1394 = vmatpush2.msra.mxu0 0.0
    %1395 = vmatprep.subr.mxu0 0.0
    %1396 = vmatpush2.msra.mxu0 0.0
    %1397 = vmatprep.mubr.f32.mxu0 0.0
    %1398 = vmatmul.mubr.f32.gmra.mxu0 %v1331
    %v1399 = vpop.f32.mrf.mxu0
    %v1400 = vadd.f32 0.0, %v1399
    %v1401 = vpop.f32.mrf.mxu0
    %1402 = vdwg.mxu0
    %v1403 = vrcp.pop 8.0
    %v1404 = vmul.f32 %v1400, %v1403
    %v1405 = vld [vmem:[%s8] sm:$0x1]
    %v1407 = vlaneseq
    %v1408 = vshrl.u32 %v1407, 7
    %v1409 = vsub.s32 0, %v1408
    %v1410 = vrot.slane %v1405, %v1409
    %v1412 = vadd.f32 %v1404, %v1410
    %v1413 = vadd.f32 %v1323, %v1412
    %vm1414 = vcmp.gt.f32.partialorder %v1413, 0.0
    %v1415 = vmin.f32 %v1413, 0.0
    %v1416 = vmul.f32 %v1415, 1.442695
    %v1417 = vpow.pop %v1416
    %v1418 = vsub.f32 %v1417, 1.0
    %v1419 = vsel %vm1414, %v1413, %v1418
    %vm1420 = vcmask 58368
    %1421 = vst.msk [vmem:[#allocation7] sm:$0x3] %vm1420, %v1419
    // Predicated region
    $region46: #{tpu_custom_call.1} parent=1 // pred_check
      _
    $region47: #{tpu_custom_call.1} parent=1 // pred_check_branch
      %1423 = sbr.rel (0) target = $region49
    $region48: #{tpu_custom_call.1} parent=1 // pred_region
      %s1425 = ssub.s32 32, 32
      %1426 = vsyncadd [#allocation4], %s1425
      %s1428 = sshll.u32 [#allocation7], 4
      %s1429 = int_to_ptr.vmem [resolvable:$true] %s1428
      %1431 = dma.vmem_to_hbm [thread:$0]  %s1429, 32, %s9, [#allocation4]
    $region49: #{tpu_custom_call.1} parent=1 // pred_fallthru
      _
    // Predicated region
    $region50: #{tpu_custom_call.1} parent=1 // pred_check
      _
    $region51: #{tpu_custom_call.1} parent=1 // pred_check_branch
      %1433 = sbr.rel (0) target = $region53
    $region52: #{tpu_custom_call.1} parent=1 // pred_region
      %1434 = dma.done [#allocation4], 32
    $region53: #{tpu_custom_call.1} parent=1 // pred_fallthru
      _
    %1435 = vsyncpa [#allocation3], 1
    %1436 = vsyncpa [#allocation6], 1
    %1437 = vsyncpa [#allocation4], 1

</llo_original>
